<compile_context>
chip_gen: v7x
topology: tpu7x:2x2x1
jax: 0.10.0
libtpu: 0.0.40
codegen_flags: <defaults>
</compile_context>

<pallas_src>
import math
from functools import partial

import jax
import jax.numpy as jnp
from jax import lax
from jax.experimental import pallas as pl
from jax.experimental.pallas import tpu as pltpu


def lstm_kernel(x_ref, wx_ref, wh_ref, b_ref, wfc_ref, bfc_ref, out_ref,
                xw_ref):
    """x_ref:  (S*Bp, D)  bf16, time-major batch-padded input
       wx_ref: (D, 4*Hp)  bf16, wh_ref: (Hp, 4*Hp) bf16
       b_ref:  (1, 4*Hp)  f32  (bx + bh, per-gate zero-padded)
       wfc_ref:(Hp, Op)   bf16, bfc_ref: (1, Op) f32
       out_ref:(Bp, Op)   f32
       xw_ref: (S*Bp, 4*Hp) f32 VMEM scratch for the hoisted input proj."""
    Bp = out_ref.shape[0]
    Hp = wh_ref.shape[0]
    S = x_ref.shape[0] // Bp

    # Hoisted, timestep-independent input projection for all steps at once
    # (one MXU push), accumulated in f32 and parked in VMEM scratch.
    xw_ref[...] = (
        jnp.dot(x_ref[...], wx_ref[...], preferred_element_type=jnp.float32)
        + b_ref[...])

    # Loop-invariant recurrent weight, loaded once (bf16 MXU RHS).
    wh = wh_ref[...]

    def step(t, carry):
        h, c = carry                                     # f32 (Bp, Hp)
        start = pl.multiple_of(t * Bp, Bp)
        gates = xw_ref[pl.ds(start, Bp), :] + jnp.dot(
            h.astype(jnp.bfloat16), wh,
            preferred_element_type=jnp.float32)          # f32 (Bp, 4*Hp)
        ingate = jax.nn.sigmoid(gates[:, 0 * Hp:1 * Hp])
        forgetgate = jax.nn.sigmoid(gates[:, 1 * Hp:2 * Hp])
        cellgate = jnp.tanh(gates[:, 2 * Hp:3 * Hp])
        outgate = jax.nn.sigmoid(gates[:, 3 * Hp:4 * Hp])
        c = c * forgetgate + ingate * cellgate
        h = outgate * jnp.tanh(c)
        return h, c

    h0 = jnp.zeros((Bp, Hp), jnp.float32)
    c0 = jnp.zeros((Bp, Hp), jnp.float32)
    h, _ = lax.fori_loop(0, S, step, (h0, c0), unroll=True)

    # Fused fc + sigmoid, lane-dense (Op is a multiple of 128) output store.
    logits = (jnp.dot(h.astype(jnp.bfloat16), wfc_ref[...],
                      preferred_element_type=jnp.float32) + bfc_ref[...])
    out_ref[...] = jax.nn.sigmoid(logits).astype(out_ref.dtype)


SUB, LANE = 8, 128  # f32 sublane / lane granularity


def _pad_gate_cols(w, hidden, hidden_pad):
    """Zero-pad each of the 4 gate blocks along the last axis to hidden_pad."""
    parts = jnp.split(w, 4, axis=-1)
    pad_width = [(0, 0)] * (w.ndim - 1) + [(0, hidden_pad - hidden)]
    return jnp.concatenate([jnp.pad(p, pad_width) for p in parts], axis=-1)


def prepare_params(params):
    """One-time, parameter-only preprocessing (hoisted out of the call path):
    combined bias, per-gate lane padding to Hp=128, fc padding, bf16 casts."""
    H = params["wh"].shape[0]
    O = params["wfc"].shape[1]
    Hp = ((H + LANE - 1) // LANE) * LANE
    Op = ((O + LANE - 1) // LANE) * LANE

    wx_p = _pad_gate_cols(params["wx"], H, Hp).astype(jnp.bfloat16)
    wh_p = _pad_gate_cols(
        jnp.pad(params["wh"], ((0, Hp - H), (0, 0))), H, Hp
    ).astype(jnp.bfloat16)
    b_p = _pad_gate_cols(
        (params["bx"] + params["bh"]).reshape(1, 4 * H), H, Hp
    ).astype(jnp.float32)
    wfc_p = jnp.pad(params["wfc"],
                    ((0, Hp - H), (0, Op - O))).astype(jnp.bfloat16)
    bfc_p = jnp.pad(params["bfc"], (0, Op - O)).reshape(1, Op).astype(
        jnp.float32)
    return {"wx": wx_p, "wh": wh_p, "b": b_p, "wfc": wfc_p, "bfc": bfc_p}


@partial(jax.jit, static_argnames=("out_dim",))
def lstm_model_forward(x, prep, *, out_dim):
    """x: (batch, seq, input_dim) f32.  Returns sigmoid(fc(h_T)), squeezed."""
    B, S, D = x.shape
    Hp = prep["wh"].shape[0]
    Op = prep["wfc"].shape[1]
    Bp = ((B + SUB - 1) // SUB) * SUB

    # Per-call input layout: time-major, batch-padded, flattened, bf16.
    x_tm = jnp.transpose(x, (1, 0, 2))                     # (S, B, D)
    x_p = jnp.pad(x_tm, ((0, 0), (0, Bp - B), (0, 0)))     # (S, Bp, D)
    x_flat = x_p.reshape(S * Bp, D).astype(jnp.bfloat16)   # (S*Bp, D)

    vmem = pl.BlockSpec(memory_space=pltpu.MemorySpace.VMEM)
    out = pl.pallas_call(
        lstm_kernel,
        out_shape=jax.ShapeDtypeStruct((Bp, Op), jnp.float32),
        in_specs=[vmem] * 6,
        out_specs=vmem,
        scratch_shapes=[pltpu.VMEM((S * Bp, 4 * Hp), jnp.float32)],
        compiler_params=pltpu.CompilerParams(
            vmem_limit_bytes=32 * 1024 * 1024),
    )(x_flat, prep["wx"], prep["wh"], prep["b"], prep["wfc"], prep["bfc"])

    return jnp.squeeze(out[:B, :out_dim])


def init_params(key, input_dim, hidden_dim, output_dim):
    """Deterministic init mirroring the PyTorch module's parameter shapes.

    LSTMCell.reset_parameters: uniform(-1/sqrt(H), 1/sqrt(H)) for all cell
    params.  fc: default nn.Linear init uniform(-1/sqrt(H), 1/sqrt(H)).
    Weights are stored as (in, out) = torch weight.T."""
    ks = jax.random.split(key, 6)
    std = 1.0 / math.sqrt(hidden_dim)
    u = lambda k, shape: jax.random.uniform(k, shape, jnp.float32, -std, std)
    return {
        "wx": u(ks[0], (input_dim, 4 * hidden_dim)),
        "wh": u(ks[1], (hidden_dim, 4 * hidden_dim)),
        "bx": u(ks[2], (4 * hidden_dim,)),
        "bh": u(ks[3], (4 * hidden_dim,)),
        "wfc": u(ks[4], (hidden_dim, output_dim)),
        "bfc": u(ks[5], (output_dim,)),
    }


def reference_forward(x, params):
    """Pure-JAX f32 reference of the PyTorch forward (feature=None path)."""
    B, S, D = x.shape
    H = params["wh"].shape[0]
    h = jnp.zeros((B, H), jnp.float32)
    c = jnp.zeros((B, H), jnp.float32)
    for t in range(S):
        gates = (x[:, t, :] @ params["wx"] + h @ params["wh"]
                 + params["bx"] + params["bh"])
        i, f, g, o = jnp.split(gates, 4, axis=1)
        i, f, g, o = (jax.nn.sigmoid(i), jax.nn.sigmoid(f),
                      jnp.tanh(g), jax.nn.sigmoid(o))
        c = c * f + i * g
        h = o * jnp.tanh(c)
    out = jax.nn.sigmoid(h @ params["wfc"] + params["bfc"])
    return jnp.squeeze(out)


if __name__ == "__main__":
    # TODO(synk): feature / fc_feature branch (feature != None) not
    # implemented; the default feature_num=0 path (feature=None) is what is
    # reproduced here.
    batch, seq, input_dim, hidden_dim, output_dim = 2, 8, 16, 32, 4

    key = jax.random.PRNGKey(0)
    kx, kp = jax.random.split(key)
    x = jax.random.normal(kx, (batch, seq, input_dim), jnp.float32)
    params = init_params(kp, input_dim, hidden_dim, output_dim)

    prep = prepare_params(params)              # one-time, parameter-only
    out = lstm_model_forward(x, prep, out_dim=output_dim)
    out = jax.block_until_ready(out)

    ref = reference_forward(x, params)
    assert out.shape == ref.shape, (out.shape, ref.shape)
    # bf16 MXU operands => agreement with the f32 reference at bf16-level tol.
    assert jnp.allclose(out, ref, atol=2e-2, rtol=2e-2), (out, ref)

    print("KERNEL_OK")
</pallas_src>

<mosaic_0001>
module attributes {stable_mosaic.version = 11 : i64} {
  func.func @lstm_kernel(%arg0: memref<64x16xbf16, #tpu.memory_space<vmem>>, %arg1: memref<16x512xbf16, #tpu.memory_space<vmem>>, %arg2: memref<128x512xbf16, #tpu.memory_space<vmem>>, %arg3: memref<1x512xf32, #tpu.memory_space<vmem>>, %arg4: memref<128x128xbf16, #tpu.memory_space<vmem>>, %arg5: memref<1x128xf32, #tpu.memory_space<vmem>>, %arg6: memref<8x128xf32, #tpu.memory_space<vmem>>, %arg7: memref<64x512xf32, #tpu.memory_space<vmem>>) attributes {dimension_semantics = [], scalar_prefetch = 0 : i64, scratch_operands = 1 : i64, tpu.core_type = #tpu.core_type<tc>} {
    %c0 = arith.constant 0 : index
    %c0_0 = arith.constant 0 : index
    %0 = vector.load %arg0[%c0, %c0_0] : memref<64x16xbf16, #tpu.memory_space<vmem>>, vector<64x16xbf16>
    %c0_1 = arith.constant 0 : index
    %c0_2 = arith.constant 0 : index
    %1 = vector.load %arg1[%c0_1, %c0_2] : memref<16x512xbf16, #tpu.memory_space<vmem>>, vector<16x512xbf16>
    %cst = arith.constant dense<0.000000e+00> : vector<64x512xf32>
    %2 = tpu.matmul %0, %1, %cst {dimension_numbers = #tpu.dot_dimension_numbers<[1], [0], [0], [1], [0, 0, 1, 1], [], []>} : vector<64x16xbf16>, vector<16x512xbf16>, vector<64x512xf32> -> vector<64x512xf32>
    %c0_3 = arith.constant 0 : index
    %c0_4 = arith.constant 0 : index
    %3 = vector.load %arg3[%c0_3, %c0_4] : memref<1x512xf32, #tpu.memory_space<vmem>>, vector<1x512xf32>
    %4 = vector.broadcast %3 : vector<1x512xf32> to vector<64x512xf32>
    %5 = arith.addf %2, %4 : vector<64x512xf32>
    %c0_5 = arith.constant 0 : index
    %c0_6 = arith.constant 0 : index
    %6 = vector.load %arg7[%c0_5, %c0_6] : memref<64x512xf32, #tpu.memory_space<vmem>>, vector<64x512xf32>
    tpu.vector_store %arg7[%c0_5, %c0_6], %5 {strides = array<i32>} : memref<64x512xf32, #tpu.memory_space<vmem>>, vector<64x512xf32>,
    %c0_7 = arith.constant 0 : index
    %c0_8 = arith.constant 0 : index
    %7 = vector.load %arg2[%c0_7, %c0_8] : memref<128x512xbf16, #tpu.memory_space<vmem>>, vector<128x512xbf16>
    %cst_9 = arith.constant 0.000000e+00 : f32
    %8 = vector.broadcast %cst_9 : f32 to vector<8x128xf32>
    %cst_10 = arith.constant 0.000000e+00 : f32
    %9 = vector.broadcast %cst_10 : f32 to vector<8x128xf32>
    %c0_i32 = arith.constant 0 : i32
    %c8_i32 = arith.constant 8 : i32
    %10 = arith.muli %c0_i32, %c8_i32 : i32
    %11 = tpu.assume_multiple %10, 8 : i32
    %12 = arith.index_cast %11 : i32 to index
    %c0_11 = arith.constant 0 : index
    %13 = vector.load %arg7[%12, %c0_11] : memref<64x512xf32, #tpu.memory_space<vmem>>, vector<8x512xf32>
    %14 = arith.truncf %8 : vector<8x128xf32> to vector<8x128xbf16>
    %cst_12 = arith.constant dense<0.000000e+00> : vector<8x512xf32>
    %15 = tpu.matmul %14, %7, %cst_12 {dimension_numbers = #tpu.dot_dimension_numbers<[1], [0], [0], [1], [0, 0, 1, 1], [], []>} : vector<8x128xbf16>, vector<128x512xbf16>, vector<8x512xf32> -> vector<8x512xf32>
    %16 = arith.addf %13, %15 : vector<8x512xf32>
    %17 = vector.extract_strided_slice %16 {offsets = [0, 0], sizes = [8, 128], strides = [1, 1]} : vector<8x512xf32> to vector<8x128xf32>
    %18 = arith.negf %17 : vector<8x128xf32>
    %19 = math.exp %18 : vector<8x128xf32>
    %cst_13 = arith.constant 1.000000e+00 : f32
    %20 = vector.broadcast %cst_13 : f32 to vector<8x128xf32>
    %21 = arith.addf %20, %19 : vector<8x128xf32>
    %22 = arith.divf %20, %21 : vector<8x128xf32>
    %23 = vector.extract_strided_slice %16 {offsets = [0, 128], sizes = [8, 128], strides = [1, 1]} : vector<8x512xf32> to vector<8x128xf32>
    %24 = arith.negf %23 : vector<8x128xf32>
    %25 = math.exp %24 : vector<8x128xf32>
    %cst_14 = arith.constant 1.000000e+00 : f32
    %26 = vector.broadcast %cst_14 : f32 to vector<8x128xf32>
    %27 = arith.addf %26, %25 : vector<8x128xf32>
    %28 = arith.divf %26, %27 : vector<8x128xf32>
    %29 = vector.extract_strided_slice %16 {offsets = [0, 256], sizes = [8, 128], strides = [1, 1]} : vector<8x512xf32> to vector<8x128xf32>
    %30 = math.tanh %29 : vector<8x128xf32>
    %31 = vector.extract_strided_slice %16 {offsets = [0, 384], sizes = [8, 128], strides = [1, 1]} : vector<8x512xf32> to vector<8x128xf32>
    %32 = arith.negf %31 : vector<8x128xf32>
    %33 = math.exp %32 : vector<8x128xf32>
    %cst_15 = arith.constant 1.000000e+00 : f32
    %34 = vector.broadcast %cst_15 : f32 to vector<8x128xf32>
    %35 = arith.addf %34, %33 : vector<8x128xf32>
    %36 = arith.divf %34, %35 : vector<8x128xf32>
    %37 = arith.mulf %9, %28 : vector<8x128xf32>
    %38 = arith.mulf %22, %30 : vector<8x128xf32>
    %39 = arith.addf %37, %38 : vector<8x128xf32>
    %40 = math.tanh %39 : vector<8x128xf32>
    %41 = arith.mulf %36, %40 : vector<8x128xf32>
    %c1_i32 = arith.constant 1 : i32
    %c8_i32_16 = arith.constant 8 : i32
    %42 = arith.muli %c1_i32, %c8_i32_16 : i32
    %43 = tpu.assume_multiple %42, 8 : i32
    %44 = arith.index_cast %43 : i32 to index
    %c0_17 = arith.constant 0 : index
    %45 = vector.load %arg7[%44, %c0_17] : memref<64x512xf32, #tpu.memory_space<vmem>>, vector<8x512xf32>
    %46 = arith.truncf %41 : vector<8x128xf32> to vector<8x128xbf16>
    %cst_18 = arith.constant dense<0.000000e+00> : vector<8x512xf32>
    %47 = tpu.matmul %46, %7, %cst_18 {dimension_numbers = #tpu.dot_dimension_numbers<[1], [0], [0], [1], [0, 0, 1, 1], [], []>} : vector<8x128xbf16>, vector<128x512xbf16>, vector<8x512xf32> -> vector<8x512xf32>
    %48 = arith.addf %45, %47 : vector<8x512xf32>
    %49 = vector.extract_strided_slice %48 {offsets = [0, 0], sizes = [8, 128], strides = [1, 1]} : vector<8x512xf32> to vector<8x128xf32>
    %50 = arith.negf %49 : vector<8x128xf32>
    %51 = math.exp %50 : vector<8x128xf32>
    %cst_19 = arith.constant 1.000000e+00 : f32
    %52 = vector.broadcast %cst_19 : f32 to vector<8x128xf32>
    %53 = arith.addf %52, %51 : vector<8x128xf32>
    %54 = arith.divf %52, %53 : vector<8x128xf32>
    %55 = vector.extract_strided_slice %48 {offsets = [0, 128], sizes = [8, 128], strides = [1, 1]} : vector<8x512xf32> to vector<8x128xf32>
    %56 = arith.negf %55 : vector<8x128xf32>
    %57 = math.exp %56 : vector<8x128xf32>
    %cst_20 = arith.constant 1.000000e+00 : f32
    %58 = vector.broadcast %cst_20 : f32 to vector<8x128xf32>
    %59 = arith.addf %58, %57 : vector<8x128xf32>
    %60 = arith.divf %58, %59 : vector<8x128xf32>
    %61 = vector.extract_strided_slice %48 {offsets = [0, 256], sizes = [8, 128], strides = [1, 1]} : vector<8x512xf32> to vector<8x128xf32>
    %62 = math.tanh %61 : vector<8x128xf32>
    %63 = vector.extract_strided_slice %48 {offsets = [0, 384], sizes = [8, 128], strides = [1, 1]} : vector<8x512xf32> to vector<8x128xf32>
    %64 = arith.negf %63 : vector<8x128xf32>
    %65 = math.exp %64 : vector<8x128xf32>
    %cst_21 = arith.constant 1.000000e+00 : f32
    %66 = vector.broadcast %cst_21 : f32 to vector<8x128xf32>
    %67 = arith.addf %66, %65 : vector<8x128xf32>
    %68 = arith.divf %66, %67 : vector<8x128xf32>
    %69 = arith.mulf %39, %60 : vector<8x128xf32>
    %70 = arith.mulf %54, %62 : vector<8x128xf32>
    %71 = arith.addf %69, %70 : vector<8x128xf32>
    %72 = math.tanh %71 : vector<8x128xf32>
    %73 = arith.mulf %68, %72 : vector<8x128xf32>
    %c2_i32 = arith.constant 2 : i32
    %c8_i32_22 = arith.constant 8 : i32
    %74 = arith.muli %c2_i32, %c8_i32_22 : i32
    %75 = tpu.assume_multiple %74, 8 : i32
    %76 = arith.index_cast %75 : i32 to index
    %c0_23 = arith.constant 0 : index
    %77 = vector.load %arg7[%76, %c0_23] : memref<64x512xf32, #tpu.memory_space<vmem>>, vector<8x512xf32>
    %78 = arith.truncf %73 : vector<8x128xf32> to vector<8x128xbf16>
    %cst_24 = arith.constant dense<0.000000e+00> : vector<8x512xf32>
    %79 = tpu.matmul %78, %7, %cst_24 {dimension_numbers = #tpu.dot_dimension_numbers<[1], [0], [0], [1], [0, 0, 1, 1], [], []>} : vector<8x128xbf16>, vector<128x512xbf16>, vector<8x512xf32> -> vector<8x512xf32>
    %80 = arith.addf %77, %79 : vector<8x512xf32>
    %81 = vector.extract_strided_slice %80 {offsets = [0, 0], sizes = [8, 128], strides = [1, 1]} : vector<8x512xf32> to vector<8x128xf32>
    %82 = arith.negf %81 : vector<8x128xf32>
    %83 = math.exp %82 : vector<8x128xf32>
    %cst_25 = arith.constant 1.000000e+00 : f32
    %84 = vector.broadcast %cst_25 : f32 to vector<8x128xf32>
    %85 = arith.addf %84, %83 : vector<8x128xf32>
    %86 = arith.divf %84, %85 : vector<8x128xf32>
    %87 = vector.extract_strided_slice %80 {offsets = [0, 128], sizes = [8, 128], strides = [1, 1]} : vector<8x512xf32> to vector<8x128xf32>
    %88 = arith.negf %87 : vector<8x128xf32>
    %89 = math.exp %88 : vector<8x128xf32>
    %cst_26 = arith.constant 1.000000e+00 : f32
    %90 = vector.broadcast %cst_26 : f32 to vector<8x128xf32>
    %91 = arith.addf %90, %89 : vector<8x128xf32>
    %92 = arith.divf %90, %91 : vector<8x128xf32>
    %93 = vector.extract_strided_slice %80 {offsets = [0, 256], sizes = [8, 128], strides = [1, 1]} : vector<8x512xf32> to vector<8x128xf32>
    %94 = math.tanh %93 : vector<8x128xf32>
    %95 = vector.extract_strided_slice %80 {offsets = [0, 384], sizes = [8, 128], strides = [1, 1]} : vector<8x512xf32> to vector<8x128xf32>
    %96 = arith.negf %95 : vector<8x128xf32>
    %97 = math.exp %96 : vector<8x128xf32>
    %cst_27 = arith.constant 1.000000e+00 : f32
    %98 = vector.broadcast %cst_27 : f32 to vector<8x128xf32>
    %99 = arith.addf %98, %97 : vector<8x128xf32>
    %100 = arith.divf %98, %99 : vector<8x128xf32>
    %101 = arith.mulf %71, %92 : vector<8x128xf32>
    %102 = arith.mulf %86, %94 : vector<8x128xf32>
    %103 = arith.addf %101, %102 : vector<8x128xf32>
    %104 = math.tanh %103 : vector<8x128xf32>
    %105 = arith.mulf %100, %104 : vector<8x128xf32>
    %c3_i32 = arith.constant 3 : i32
    %c8_i32_28 = arith.constant 8 : i32
    %106 = arith.muli %c3_i32, %c8_i32_28 : i32
    %107 = tpu.assume_multiple %106, 8 : i32
    %108 = arith.index_cast %107 : i32 to index
    %c0_29 = arith.constant 0 : index
    %109 = vector.load %arg7[%108, %c0_29] : memref<64x512xf32, #tpu.memory_space<vmem>>, vector<8x512xf32>
    %110 = arith.truncf %105 : vector<8x128xf32> to vector<8x128xbf16>
    %cst_30 = arith.constant dense<0.000000e+00> : vector<8x512xf32>
    %111 = tpu.matmul %110, %7, %cst_30 {dimension_numbers = #tpu.dot_dimension_numbers<[1], [0], [0], [1], [0, 0, 1, 1], [], []>} : vector<8x128xbf16>, vector<128x512xbf16>, vector<8x512xf32> -> vector<8x512xf32>
    %112 = arith.addf %109, %111 : vector<8x512xf32>
    %113 = vector.extract_strided_slice %112 {offsets = [0, 0], sizes = [8, 128], strides = [1, 1]} : vector<8x512xf32> to vector<8x128xf32>
    %114 = arith.negf %113 : vector<8x128xf32>
    %115 = math.exp %114 : vector<8x128xf32>
    %cst_31 = arith.constant 1.000000e+00 : f32
    %116 = vector.broadcast %cst_31 : f32 to vector<8x128xf32>
    %117 = arith.addf %116, %115 : vector<8x128xf32>
    %118 = arith.divf %116, %117 : vector<8x128xf32>
    %119 = vector.extract_strided_slice %112 {offsets = [0, 128], sizes = [8, 128], strides = [1, 1]} : vector<8x512xf32> to vector<8x128xf32>
    %120 = arith.negf %119 : vector<8x128xf32>
    %121 = math.exp %120 : vector<8x128xf32>
    %cst_32 = arith.constant 1.000000e+00 : f32
    %122 = vector.broadcast %cst_32 : f32 to vector<8x128xf32>
    %123 = arith.addf %122, %121 : vector<8x128xf32>
    %124 = arith.divf %122, %123 : vector<8x128xf32>
    %125 = vector.extract_strided_slice %112 {offsets = [0, 256], sizes = [8, 128], strides = [1, 1]} : vector<8x512xf32> to vector<8x128xf32>
    %126 = math.tanh %125 : vector<8x128xf32>
    %127 = vector.extract_strided_slice %112 {offsets = [0, 384], sizes = [8, 128], strides = [1, 1]} : vector<8x512xf32> to vector<8x128xf32>
    %128 = arith.negf %127 : vector<8x128xf32>
    %129 = math.exp %128 : vector<8x128xf32>
    %cst_33 = arith.constant 1.000000e+00 : f32
    %130 = vector.broadcast %cst_33 : f32 to vector<8x128xf32>
    %131 = arith.addf %130, %129 : vector<8x128xf32>
    %132 = arith.divf %130, %131 : vector<8x128xf32>
    %133 = arith.mulf %103, %124 : vector<8x128xf32>
    %134 = arith.mulf %118, %126 : vector<8x128xf32>
    %135 = arith.addf %133, %134 : vector<8x128xf32>
    %136 = math.tanh %135 : vector<8x128xf32>
    %137 = arith.mulf %132, %136 : vector<8x128xf32>
    %c4_i32 = arith.constant 4 : i32
    %c8_i32_34 = arith.constant 8 : i32
    %138 = arith.muli %c4_i32, %c8_i32_34 : i32
    %139 = tpu.assume_multiple %138, 8 : i32
    %140 = arith.index_cast %139 : i32 to index
    %c0_35 = arith.constant 0 : index
    %141 = vector.load %arg7[%140, %c0_35] : memref<64x512xf32, #tpu.memory_space<vmem>>, vector<8x512xf32>
    %142 = arith.truncf %137 : vector<8x128xf32> to vector<8x128xbf16>
    %cst_36 = arith.constant dense<0.000000e+00> : vector<8x512xf32>
    %143 = tpu.matmul %142, %7, %cst_36 {dimension_numbers = #tpu.dot_dimension_numbers<[1], [0], [0], [1], [0, 0, 1, 1], [], []>} : vector<8x128xbf16>, vector<128x512xbf16>, vector<8x512xf32> -> vector<8x512xf32>
    %144 = arith.addf %141, %143 : vector<8x512xf32>
    %145 = vector.extract_strided_slice %144 {offsets = [0, 0], sizes = [8, 128], strides = [1, 1]} : vector<8x512xf32> to vector<8x128xf32>
    %146 = arith.negf %145 : vector<8x128xf32>
    %147 = math.exp %146 : vector<8x128xf32>
    %cst_37 = arith.constant 1.000000e+00 : f32
    %148 = vector.broadcast %cst_37 : f32 to vector<8x128xf32>
    %149 = arith.addf %148, %147 : vector<8x128xf32>
    %150 = arith.divf %148, %149 : vector<8x128xf32>
    %151 = vector.extract_strided_slice %144 {offsets = [0, 128], sizes = [8, 128], strides = [1, 1]} : vector<8x512xf32> to vector<8x128xf32>
    %152 = arith.negf %151 : vector<8x128xf32>
    %153 = math.exp %152 : vector<8x128xf32>
    %cst_38 = arith.constant 1.000000e+00 : f32
    %154 = vector.broadcast %cst_38 : f32 to vector<8x128xf32>
    %155 = arith.addf %154, %153 : vector<8x128xf32>
    %156 = arith.divf %154, %155 : vector<8x128xf32>
    %157 = vector.extract_strided_slice %144 {offsets = [0, 256], sizes = [8, 128], strides = [1, 1]} : vector<8x512xf32> to vector<8x128xf32>
    %158 = math.tanh %157 : vector<8x128xf32>
    %159 = vector.extract_strided_slice %144 {offsets = [0, 384], sizes = [8, 128], strides = [1, 1]} : vector<8x512xf32> to vector<8x128xf32>
    %160 = arith.negf %159 : vector<8x128xf32>
    %161 = math.exp %160 : vector<8x128xf32>
    %cst_39 = arith.constant 1.000000e+00 : f32
    %162 = vector.broadcast %cst_39 : f32 to vector<8x128xf32>
    %163 = arith.addf %162, %161 : vector<8x128xf32>
    %164 = arith.divf %162, %163 : vector<8x128xf32>
    %165 = arith.mulf %135, %156 : vector<8x128xf32>
    %166 = arith.mulf %150, %158 : vector<8x128xf32>
    %167 = arith.addf %165, %166 : vector<8x128xf32>
    %168 = math.tanh %167 : vector<8x128xf32>
    %169 = arith.mulf %164, %168 : vector<8x128xf32>
    %c5_i32 = arith.constant 5 : i32
    %c8_i32_40 = arith.constant 8 : i32
    %170 = arith.muli %c5_i32, %c8_i32_40 : i32
    %171 = tpu.assume_multiple %170, 8 : i32
    %172 = arith.index_cast %171 : i32 to index
    %c0_41 = arith.constant 0 : index
    %173 = vector.load %arg7[%172, %c0_41] : memref<64x512xf32, #tpu.memory_space<vmem>>, vector<8x512xf32>
    %174 = arith.truncf %169 : vector<8x128xf32> to vector<8x128xbf16>
    %cst_42 = arith.constant dense<0.000000e+00> : vector<8x512xf32>
    %175 = tpu.matmul %174, %7, %cst_42 {dimension_numbers = #tpu.dot_dimension_numbers<[1], [0], [0], [1], [0, 0, 1, 1], [], []>} : vector<8x128xbf16>, vector<128x512xbf16>, vector<8x512xf32> -> vector<8x512xf32>
    %176 = arith.addf %173, %175 : vector<8x512xf32>
    %177 = vector.extract_strided_slice %176 {offsets = [0, 0], sizes = [8, 128], strides = [1, 1]} : vector<8x512xf32> to vector<8x128xf32>
    %178 = arith.negf %177 : vector<8x128xf32>
    %179 = math.exp %178 : vector<8x128xf32>
    %cst_43 = arith.constant 1.000000e+00 : f32
    %180 = vector.broadcast %cst_43 : f32 to vector<8x128xf32>
    %181 = arith.addf %180, %179 : vector<8x128xf32>
    %182 = arith.divf %180, %181 : vector<8x128xf32>
    %183 = vector.extract_strided_slice %176 {offsets = [0, 128], sizes = [8, 128], strides = [1, 1]} : vector<8x512xf32> to vector<8x128xf32>
    %184 = arith.negf %183 : vector<8x128xf32>
    %185 = math.exp %184 : vector<8x128xf32>
    %cst_44 = arith.constant 1.000000e+00 : f32
    %186 = vector.broadcast %cst_44 : f32 to vector<8x128xf32>
    %187 = arith.addf %186, %185 : vector<8x128xf32>
    %188 = arith.divf %186, %187 : vector<8x128xf32>
    %189 = vector.extract_strided_slice %176 {offsets = [0, 256], sizes = [8, 128], strides = [1, 1]} : vector<8x512xf32> to vector<8x128xf32>
    %190 = math.tanh %189 : vector<8x128xf32>
    %191 = vector.extract_strided_slice %176 {offsets = [0, 384], sizes = [8, 128], strides = [1, 1]} : vector<8x512xf32> to vector<8x128xf32>
    %192 = arith.negf %191 : vector<8x128xf32>
    %193 = math.exp %192 : vector<8x128xf32>
    %cst_45 = arith.constant 1.000000e+00 : f32
    %194 = vector.broadcast %cst_45 : f32 to vector<8x128xf32>
    %195 = arith.addf %194, %193 : vector<8x128xf32>
    %196 = arith.divf %194, %195 : vector<8x128xf32>
    %197 = arith.mulf %167, %188 : vector<8x128xf32>
    %198 = arith.mulf %182, %190 : vector<8x128xf32>
    %199 = arith.addf %197, %198 : vector<8x128xf32>
    %200 = math.tanh %199 : vector<8x128xf32>
    %201 = arith.mulf %196, %200 : vector<8x128xf32>
    %c6_i32 = arith.constant 6 : i32
    %c8_i32_46 = arith.constant 8 : i32
    %202 = arith.muli %c6_i32, %c8_i32_46 : i32
    %203 = tpu.assume_multiple %202, 8 : i32
    %204 = arith.index_cast %203 : i32 to index
    %c0_47 = arith.constant 0 : index
    %205 = vector.load %arg7[%204, %c0_47] : memref<64x512xf32, #tpu.memory_space<vmem>>, vector<8x512xf32>
    %206 = arith.truncf %201 : vector<8x128xf32> to vector<8x128xbf16>
    %cst_48 = arith.constant dense<0.000000e+00> : vector<8x512xf32>
    %207 = tpu.matmul %206, %7, %cst_48 {dimension_numbers = #tpu.dot_dimension_numbers<[1], [0], [0], [1], [0, 0, 1, 1], [], []>} : vector<8x128xbf16>, vector<128x512xbf16>, vector<8x512xf32> -> vector<8x512xf32>
    %208 = arith.addf %205, %207 : vector<8x512xf32>
    %209 = vector.extract_strided_slice %208 {offsets = [0, 0], sizes = [8, 128], strides = [1, 1]} : vector<8x512xf32> to vector<8x128xf32>
    %210 = arith.negf %209 : vector<8x128xf32>
    %211 = math.exp %210 : vector<8x128xf32>
    %cst_49 = arith.constant 1.000000e+00 : f32
    %212 = vector.broadcast %cst_49 : f32 to vector<8x128xf32>
    %213 = arith.addf %212, %211 : vector<8x128xf32>
    %214 = arith.divf %212, %213 : vector<8x128xf32>
    %215 = vector.extract_strided_slice %208 {offsets = [0, 128], sizes = [8, 128], strides = [1, 1]} : vector<8x512xf32> to vector<8x128xf32>
    %216 = arith.negf %215 : vector<8x128xf32>
    %217 = math.exp %216 : vector<8x128xf32>
    %cst_50 = arith.constant 1.000000e+00 : f32
    %218 = vector.broadcast %cst_50 : f32 to vector<8x128xf32>
    %219 = arith.addf %218, %217 : vector<8x128xf32>
    %220 = arith.divf %218, %219 : vector<8x128xf32>
    %221 = vector.extract_strided_slice %208 {offsets = [0, 256], sizes = [8, 128], strides = [1, 1]} : vector<8x512xf32> to vector<8x128xf32>
    %222 = math.tanh %221 : vector<8x128xf32>
    %223 = vector.extract_strided_slice %208 {offsets = [0, 384], sizes = [8, 128], strides = [1, 1]} : vector<8x512xf32> to vector<8x128xf32>
    %224 = arith.negf %223 : vector<8x128xf32>
    %225 = math.exp %224 : vector<8x128xf32>
    %cst_51 = arith.constant 1.000000e+00 : f32
    %226 = vector.broadcast %cst_51 : f32 to vector<8x128xf32>
    %227 = arith.addf %226, %225 : vector<8x128xf32>
    %228 = arith.divf %226, %227 : vector<8x128xf32>
    %229 = arith.mulf %199, %220 : vector<8x128xf32>
    %230 = arith.mulf %214, %222 : vector<8x128xf32>
    %231 = arith.addf %229, %230 : vector<8x128xf32>
    %232 = math.tanh %231 : vector<8x128xf32>
    %233 = arith.mulf %228, %232 : vector<8x128xf32>
    %c7_i32 = arith.constant 7 : i32
    %c8_i32_52 = arith.constant 8 : i32
    %234 = arith.muli %c7_i32, %c8_i32_52 : i32
    %235 = tpu.assume_multiple %234, 8 : i32
    %236 = arith.index_cast %235 : i32 to index
    %c0_53 = arith.constant 0 : index
    %237 = vector.load %arg7[%236, %c0_53] : memref<64x512xf32, #tpu.memory_space<vmem>>, vector<8x512xf32>
    %238 = arith.truncf %233 : vector<8x128xf32> to vector<8x128xbf16>
    %cst_54 = arith.constant dense<0.000000e+00> : vector<8x512xf32>
    %239 = tpu.matmul %238, %7, %cst_54 {dimension_numbers = #tpu.dot_dimension_numbers<[1], [0], [0], [1], [0, 0, 1, 1], [], []>} : vector<8x128xbf16>, vector<128x512xbf16>, vector<8x512xf32> -> vector<8x512xf32>
    %240 = arith.addf %237, %239 : vector<8x512xf32>
    %241 = vector.extract_strided_slice %240 {offsets = [0, 0], sizes = [8, 128], strides = [1, 1]} : vector<8x512xf32> to vector<8x128xf32>
    %242 = arith.negf %241 : vector<8x128xf32>
    %243 = math.exp %242 : vector<8x128xf32>
    %cst_55 = arith.constant 1.000000e+00 : f32
    %244 = vector.broadcast %cst_55 : f32 to vector<8x128xf32>
    %245 = arith.addf %244, %243 : vector<8x128xf32>
    %246 = arith.divf %244, %245 : vector<8x128xf32>
    %247 = vector.extract_strided_slice %240 {offsets = [0, 128], sizes = [8, 128], strides = [1, 1]} : vector<8x512xf32> to vector<8x128xf32>
    %248 = arith.negf %247 : vector<8x128xf32>
    %249 = math.exp %248 : vector<8x128xf32>
    %cst_56 = arith.constant 1.000000e+00 : f32
    %250 = vector.broadcast %cst_56 : f32 to vector<8x128xf32>
    %251 = arith.addf %250, %249 : vector<8x128xf32>
    %252 = arith.divf %250, %251 : vector<8x128xf32>
    %253 = vector.extract_strided_slice %240 {offsets = [0, 256], sizes = [8, 128], strides = [1, 1]} : vector<8x512xf32> to vector<8x128xf32>
    %254 = math.tanh %253 : vector<8x128xf32>
    %255 = vector.extract_strided_slice %240 {offsets = [0, 384], sizes = [8, 128], strides = [1, 1]} : vector<8x512xf32> to vector<8x128xf32>
    %256 = arith.negf %255 : vector<8x128xf32>
    %257 = math.exp %256 : vector<8x128xf32>
    %cst_57 = arith.constant 1.000000e+00 : f32
    %258 = vector.broadcast %cst_57 : f32 to vector<8x128xf32>
    %259 = arith.addf %258, %257 : vector<8x128xf32>
    %260 = arith.divf %258, %259 : vector<8x128xf32>
    %261 = arith.mulf %231, %252 : vector<8x128xf32>
    %262 = arith.mulf %246, %254 : vector<8x128xf32>
    %263 = arith.addf %261, %262 : vector<8x128xf32>
    %264 = math.tanh %263 : vector<8x128xf32>
    %265 = arith.mulf %260, %264 : vector<8x128xf32>
    %c8_i32_58 = arith.constant 8 : i32
    %266 = arith.truncf %265 : vector<8x128xf32> to vector<8x128xbf16>
    %c0_59 = arith.constant 0 : index
    %c0_60 = arith.constant 0 : index
    %267 = vector.load %arg4[%c0_59, %c0_60] : memref<128x128xbf16, #tpu.memory_space<vmem>>, vector<128x128xbf16>
    %cst_61 = arith.constant dense<0.000000e+00> : vector<8x128xf32>
    %268 = tpu.matmul %266, %267, %cst_61 {dimension_numbers = #tpu.dot_dimension_numbers<[1], [0], [0], [1], [0, 0, 1, 1], [], []>} : vector<8x128xbf16>, vector<128x128xbf16>, vector<8x128xf32> -> vector<8x128xf32>
    %c0_62 = arith.constant 0 : index
    %c0_63 = arith.constant 0 : index
    %269 = vector.load %arg5[%c0_62, %c0_63] : memref<1x128xf32, #tpu.memory_space<vmem>>, vector<1x128xf32>
    %270 = vector.broadcast %269 : vector<1x128xf32> to vector<8x128xf32>
    %271 = arith.addf %268, %270 : vector<8x128xf32>
    %272 = arith.negf %271 : vector<8x128xf32>
    %273 = math.exp %272 : vector<8x128xf32>
    %cst_64 = arith.constant 1.000000e+00 : f32
    %274 = vector.broadcast %cst_64 : f32 to vector<8x128xf32>
    %275 = arith.addf %274, %273 : vector<8x128xf32>
    %276 = arith.divf %274, %275 : vector<8x128xf32>
    %c0_65 = arith.constant 0 : index
    %c0_66 = arith.constant 0 : index
    %277 = vector.load %arg6[%c0_65, %c0_66] : memref<8x128xf32, #tpu.memory_space<vmem>>, vector<8x128xf32>
    tpu.vector_store %arg6[%c0_65, %c0_66], %276 {strides = array<i32>} : memref<8x128xf32, #tpu.memory_space<vmem>>, vector<8x128xf32>,
    return
  }
}

</mosaic_0001>

<llo_original>
// kernel: lstm_model_forward.1
$region0: #{lstm_model_forward.1}
  #allocation0 [shape = 'u32[]', space=smem, size = 0x4, offset = 0x4, fixed_abs, tag = 'smem constant byte address 0x4 - core index']
  #allocation1 [shape = 'u32[144,128]{1,0:T(1,128)}', space=vmem, size = 0x12000, scoped, tag = 'internal scratch']
  #allocation2 [shape = 'f32[64,512]{1,0:T(8,128)}', space=vmem, size = 0x20000, scoped, tag = 'scratch operand']
  %s0 = inlined_call_operand.vmem [shape: bf16[64,16], index: 0, kind: input, shape index: {}]
  %s1 = inlined_call_operand.vmem [shape: bf16[16,512], index: 1, kind: input, shape index: {}]
  %s2 = inlined_call_operand.hbm [shape: bf16[128,512], index: 2, kind: input, shape index: {}]
  %s3 = inlined_call_operand.hbm [shape: f32[1,512], index: 3, kind: input, shape index: {}]
  %s4 = inlined_call_operand.vmem [shape: bf16[128,128], index: 4, kind: input, shape index: {}]
  %s5 = inlined_call_operand.vmem [shape: f32[1,128], index: 5, kind: input, shape index: {}]
  %s6 = inlined_call_operand.vmem [shape: f32[8,128], index: 6, kind: output, shape index: {}]
  %s7 = sld [smem:[#allocation0]]
  $region42: #{lstm_model_forward.1} parent=0
    _
  %s9 = ssub.s32 1, %s7
  %s10 = scalar_select 0, %s9, %s7
  $region1: #{lstm_model_forward.1} parent=0
    #allocation3 [shape = 'u8[131072]{0}', space=vmem, size = 0x20000, scoped, tag = 'input window, operand 2, single buffered']
    #allocation4 [shape = 's32[1]{0}', space=sflag, size = 0x4, scoped, tag = 'scoped memory for lstm_model_forward.1']
    #allocation5 [shape = 'u8[2048]{0}', space=vmem, size = 0x800, scoped, tag = 'input window, operand 3, single buffered']
    #allocation6 [shape = 's32[1]{0}', space=sflag, size = 0x4, scoped, tag = 'scoped memory for lstm_model_forward.1']
    %11 = vsyncpa [#allocation4], 0
    %12 = vsyncpa [#allocation6], 0
    // Predicated region
    $region2: #{lstm_model_forward.1} parent=1 // pred_check
      _
    $region3: #{lstm_model_forward.1} parent=1 // pred_check_branch
      %14 = sbr.rel (0) target = $region5
    $region4: #{lstm_model_forward.1} parent=1 // pred_region
      _
    $region5: #{lstm_model_forward.1} parent=1 // pred_fallthru
      _
    // Predicated region
    $region6: #{lstm_model_forward.1} parent=1 // pred_check
      _
    $region7: #{lstm_model_forward.1} parent=1 // pred_check_branch
      %16 = sbr.rel (0) target = $region9
    $region8: #{lstm_model_forward.1} parent=1 // pred_region
      _
    $region9: #{lstm_model_forward.1} parent=1 // pred_fallthru
      _
    // Predicated region
    $region10: #{lstm_model_forward.1} parent=1 // pred_check
      _
    $region11: #{lstm_model_forward.1} parent=1 // pred_check_branch
      %18 = sbr.rel (0) target = $region13
    $region12: #{lstm_model_forward.1} parent=1 // pred_region
      %s20 = ssub.s32 4096, 4096
      %21 = vsyncadd [#allocation4], %s20
      %s22 = sshll.u32 [#allocation3], 4
      %s23 = int_to_ptr.vmem [resolvable:$true] %s22
      %28 = dma.hbm_to_vmem [thread:$0]  %s2, 4096, %s23, [#allocation4], 256, 256, 16
    $region13: #{lstm_model_forward.1} parent=1 // pred_fallthru
      _
    // Predicated region
    $region14: #{lstm_model_forward.1} parent=1 // pred_check
      _
    $region15: #{lstm_model_forward.1} parent=1 // pred_check_branch
      %30 = sbr.rel (0) target = $region17
    $region16: #{lstm_model_forward.1} parent=1 // pred_region
      %s32 = ssub.s32 64, 64
      %33 = vsyncadd [#allocation6], %s32
      %s35 = sshll.u32 [#allocation5], 4
      %s36 = int_to_ptr.vmem [resolvable:$true] %s35
      %38 = dma.hbm_to_vmem [thread:$0]  %s3, 64, %s36, [#allocation6]
    $region17: #{lstm_model_forward.1} parent=1 // pred_fallthru
      _
    // Predicated region
    $region18: #{lstm_model_forward.1} parent=1 // pred_check
      _
    $region19: #{lstm_model_forward.1} parent=1 // pred_check_branch
      %40 = sbr.rel (0) target = $region21
    $region20: #{lstm_model_forward.1} parent=1 // pred_region
      _
    $region21: #{lstm_model_forward.1} parent=1 // pred_fallthru
      _
    // Predicated region
    $region22: #{lstm_model_forward.1} parent=1 // pred_check
      _
    $region23: #{lstm_model_forward.1} parent=1 // pred_check_branch
      %42 = sbr.rel (0) target = $region25
    $region24: #{lstm_model_forward.1} parent=1 // pred_region
      _
    $region25: #{lstm_model_forward.1} parent=1 // pred_fallthru
      _
    // Predicated region
    $region26: #{lstm_model_forward.1} parent=1 // pred_check
      _
    $region27: #{lstm_model_forward.1} parent=1 // pred_check_branch
      %44 = sbr.rel (0) target = $region29
    $region28: #{lstm_model_forward.1} parent=1 // pred_region
      %45 = dma.done [#allocation4], 4096
    $region29: #{lstm_model_forward.1} parent=1 // pred_fallthru
      _
    // Predicated region
    $region30: #{lstm_model_forward.1} parent=1 // pred_check
      _
    $region31: #{lstm_model_forward.1} parent=1 // pred_check_branch
      %47 = sbr.rel (0) target = $region33
    $region32: #{lstm_model_forward.1} parent=1 // pred_region
      %48 = dma.done [#allocation6], 64
    $region33: #{lstm_model_forward.1} parent=1 // pred_fallthru
      _
    %v50 = vld [vmem:[%s0] sm:$0xf]
    %v51 = vld [vmem:[%s0 + $0x4] sm:$0xf]
    %v52 = vld [vmem:[%s0 + $0x8] sm:$0xf]
    %v53 = vld [vmem:[%s0 + $0xc] sm:$0xf]
    %v54 = vld [vmem:[%s0 + $0x10] sm:$0xf]
    %v55 = vld [vmem:[%s0 + $0x14] sm:$0xf]
    %v56 = vld [vmem:[%s0 + $0x18] sm:$0xf]
    %v57 = vld [vmem:[%s0 + $0x1c] sm:$0xf]
    %v58 = vld [vmem:[%s1] sm:$0xff]
    %v59 = vld [vmem:[%s1 + $0x8] sm:$0xff]
    %v60 = vld [vmem:[%s1 + $0x10] sm:$0xff]
    %v61 = vld [vmem:[%s1 + $0x18] sm:$0xff]
    %v62 = vld [vmem:[#allocation5] sm:$0xf]
    %v64 = vlaneseq
    %v65 = vshrl.u32 %v64, 7
    %v66 = vsub.s32 0, %v65
    %v67 = vrot.slane %v62, %v66
    %v68 = vlaneseq
    %v69 = vshrl.u32 %v68, 7
    %v70 = vsub.s32 1, %v69
    %v71 = vrot.slane %v62, %v70
    %v72 = vlaneseq
    %v73 = vshrl.u32 %v72, 7
    %v74 = vsub.s32 2, %v73
    %v75 = vrot.slane %v62, %v74
    %v76 = vlaneseq
    %v77 = vshrl.u32 %v76, 7
    %v78 = vsub.s32 3, %v77
    %v79 = vrot.slane %v62, %v78
    %v92 = vunpack.c.l.b16 %v50
    %v93 = vunpack.c.l.b16 %v51
    %v94 = vunpack.c.l.b16 %v52
    %v95 = vunpack.c.l.b16 %v53
    %v96 = vunpack.c.l.b16 %v54
    %v97 = vunpack.c.l.b16 %v55
    %v98 = vunpack.c.l.b16 %v56
    %v99 = vunpack.c.l.b16 %v57
    %v100 = vpack.c.b16 %v93, %v92
    %v101 = vpack.c.b16 %v95, %v94
    %v102 = vpack.c.b16 %v97, %v96
    %v103 = vpack.c.b16 %v99, %v98
    %v108 = vunpack.c.l.b16 %v58
    %v109 = vunpack.c.h.b16 %v58
    %v110 = vunpack.c.l.b16 %v59
    %v111 = vunpack.c.h.b16 %v59
    %v112 = vunpack.c.l.b16 %v60
    %v113 = vunpack.c.h.b16 %v60
    %v114 = vunpack.c.l.b16 %v61
    %v115 = vunpack.c.h.b16 %v61
    %v116 = vpack.c.b16 %v112, %v108
    %v117 = vpack.c.b16 %v113, %v109
    %v118 = vpack.c.b16 %v114, %v110
    %v119 = vpack.c.b16 %v115, %v111
    %vm124 = vcmask 130048
    %v126 = vsel %vm124, %v100, 0
    %v129 = vsel %vm124, %v101, 0
    %v132 = vsel %vm124, %v102, 0
    %v135 = vsel %vm124, %v103, 0
    %137 = vmatprep.subr.bf16.mxu0 %v117
    %138 = vmatpush1.bf16.msra.mxu0 %v116
    %139 = vmatprep.subr.bf16.mxu0 0
    %140 = vmatpush1.bf16.msra.mxu0 0
    %141 = vmatprep.subr.bf16.mxu0 0
    %142 = vmatpush1.bf16.msra.mxu0 0
    %143 = vmatprep.subr.bf16.mxu0 0
    %144 = vmatpush1.bf16.msra.mxu0 0
    %145 = vmatprep.subr.bf16.mxu0 0
    %146 = vmatpush1.bf16.msra.mxu0 0
    %147 = vmatprep.subr.bf16.mxu0 0
    %148 = vmatpush1.bf16.msra.mxu0 0
    %149 = vmatprep.subr.bf16.mxu0 0
    %150 = vmatpush1.bf16.msra.mxu0 0
    %151 = vmatprep.subr.bf16.mxu0 0
    %152 = vmatpush1.bf16.msra.mxu0 0
    %153 = vmatprep.subr.bf16.mxu0 0
    %154 = vmatpush1.bf16.msra.mxu0 0
    %155 = vmatprep.subr.bf16.mxu0 0
    %156 = vmatpush1.bf16.msra.mxu0 0
    %157 = vmatprep.subr.bf16.mxu0 0
    %158 = vmatpush1.bf16.msra.mxu0 0
    %159 = vmatprep.subr.bf16.mxu0 0
    %160 = vmatpush1.bf16.msra.mxu0 0
    %161 = vmatprep.subr.bf16.mxu0 0
    %162 = vmatpush1.bf16.msra.mxu0 0
    %163 = vmatprep.subr.bf16.mxu0 0
    %164 = vmatpush1.bf16.msra.mxu0 0
    %165 = vmatprep.subr.bf16.mxu0 0
    %166 = vmatpush1.bf16.msra.mxu0 0
    %167 = vmatprep.subr.bf16.mxu0 0
    %168 = vmatpush1.bf16.msra.mxu0 0
    %169 = vmatprep.mubr.bf16.mxu0 0
    %170 = vmatmul.mubr.bf16.gmra.mrb[0].mxu0 %v126
    %v171 = vpop.f32.mrb[0].mxu0
    %v172 = vadd.f32 %v67, %v171
    %v173 = vpop.f32.mrb[0].mxu0
    %v174 = vadd.f32 %v71, %v173
    %v175 = vpop.f32.mrb[0].mxu0
    %v176 = vadd.f32 %v67, %v175
    %v177 = vpop.f32.mrb[0].mxu0
    %v178 = vadd.f32 %v71, %v177
    %179 = vmatprep.mubr.bf16.mxu0 0
    %180 = vmatmul.mubr.bf16.gmra.mrb[0].mxu0 %v129
    %v181 = vpop.f32.mrb[0].mxu0
    %v182 = vadd.f32 %v67, %v181
    %v183 = vpop.f32.mrb[0].mxu0
    %v184 = vadd.f32 %v71, %v183
    %v185 = vpop.f32.mrb[0].mxu0
    %v186 = vadd.f32 %v67, %v185
    %v187 = vpop.f32.mrb[0].mxu0
    %v188 = vadd.f32 %v71, %v187
    %189 = vmatprep.mubr.bf16.mxu0 0
    %190 = vmatmul.mubr.bf16.gmra.mrb[0].mxu0 %v132
    %v191 = vpop.f32.mrb[0].mxu0
    %v192 = vadd.f32 %v67, %v191
    %v193 = vpop.f32.mrb[0].mxu0
    %v194 = vadd.f32 %v71, %v193
    %v195 = vpop.f32.mrb[0].mxu0
    %v196 = vadd.f32 %v67, %v195
    %v197 = vpop.f32.mrb[0].mxu0
    %v198 = vadd.f32 %v71, %v197
    %199 = vmatprep.mubr.bf16.mxu0 0
    %200 = vmatmul.mubr.bf16.gmra.mrb[0].mxu0 %v135
    %v201 = vpop.f32.mrb[0].mxu0
    %v202 = vadd.f32 %v67, %v201
    %v203 = vpop.f32.mrb[0].mxu0
    %v204 = vadd.f32 %v71, %v203
    %v205 = vpop.f32.mrb[0].mxu0
    %v206 = vadd.f32 %v67, %v205
    %v207 = vpop.f32.mrb[0].mxu0
    %v208 = vadd.f32 %v71, %v207
    %209 = vdwg.mxu0
    %210 = vmatprep.subr.bf16.mxu0 %v119
    %211 = vmatpush1.bf16.msra.mxu0 %v118
    %212 = vmatprep.subr.bf16.mxu0 0
    %213 = vmatpush1.bf16.msra.mxu0 0
    %214 = vmatprep.subr.bf16.mxu0 0
    %215 = vmatpush1.bf16.msra.mxu0 0
    %216 = vmatprep.subr.bf16.mxu0 0
    %217 = vmatpush1.bf16.msra.mxu0 0
    %218 = vmatprep.subr.bf16.mxu0 0
    %219 = vmatpush1.bf16.msra.mxu0 0
    %220 = vmatprep.subr.bf16.mxu0 0
    %221 = vmatpush1.bf16.msra.mxu0 0
    %222 = vmatprep.subr.bf16.mxu0 0
    %223 = vmatpush1.bf16.msra.mxu0 0
    %224 = vmatprep.subr.bf16.mxu0 0
    %225 = vmatpush1.bf16.msra.mxu0 0
    %226 = vmatprep.subr.bf16.mxu0 0
    %227 = vmatpush1.bf16.msra.mxu0 0
    %228 = vmatprep.subr.bf16.mxu0 0
    %229 = vmatpush1.bf16.msra.mxu0 0
    %230 = vmatprep.subr.bf16.mxu0 0
    %231 = vmatpush1.bf16.msra.mxu0 0
    %232 = vmatprep.subr.bf16.mxu0 0
    %233 = vmatpush1.bf16.msra.mxu0 0
    %234 = vmatprep.subr.bf16.mxu0 0
    %235 = vmatpush1.bf16.msra.mxu0 0
    %236 = vmatprep.subr.bf16.mxu0 0
    %237 = vmatpush1.bf16.msra.mxu0 0
    %238 = vmatprep.subr.bf16.mxu0 0
    %239 = vmatpush1.bf16.msra.mxu0 0
    %240 = vmatprep.subr.bf16.mxu0 0
    %241 = vmatpush1.bf16.msra.mxu0 0
    %242 = vmatprep.mubr.bf16.mxu0 0
    %243 = vmatmul.mubr.bf16.gmra.mrb[0].mxu0 %v126
    %v244 = vpop.f32.mrb[0].mxu0
    %v245 = vadd.f32 %v75, %v244
    %v246 = vpop.f32.mrb[0].mxu0
    %v247 = vadd.f32 %v79, %v246
    %v248 = vpop.f32.mrb[0].mxu0
    %v249 = vadd.f32 %v75, %v248
    %v250 = vpop.f32.mrb[0].mxu0
    %v251 = vadd.f32 %v79, %v250
    %252 = vmatprep.mubr.bf16.mxu0 0
    %253 = vmatmul.mubr.bf16.gmra.mrb[0].mxu0 %v129
    %v254 = vpop.f32.mrb[0].mxu0
    %v255 = vadd.f32 %v75, %v254
    %v256 = vpop.f32.mrb[0].mxu0
    %v257 = vadd.f32 %v79, %v256
    %v258 = vpop.f32.mrb[0].mxu0
    %v259 = vadd.f32 %v75, %v258
    %v260 = vpop.f32.mrb[0].mxu0
    %v261 = vadd.f32 %v79, %v260
    %262 = vmatprep.mubr.bf16.mxu0 0
    %263 = vmatmul.mubr.bf16.gmra.mrb[0].mxu0 %v132
    %v264 = vpop.f32.mrb[0].mxu0
    %v265 = vadd.f32 %v75, %v264
    %v266 = vpop.f32.mrb[0].mxu0
    %v267 = vadd.f32 %v79, %v266
    %v268 = vpop.f32.mrb[0].mxu0
    %v269 = vadd.f32 %v75, %v268
    %v270 = vpop.f32.mrb[0].mxu0
    %v271 = vadd.f32 %v79, %v270
    %272 = vmatprep.mubr.bf16.mxu0 0
    %273 = vmatmul.mubr.bf16.gmra.mrb[0].mxu0 %v135
    %v274 = vpop.f32.mrb[0].mxu0
    %v275 = vadd.f32 %v75, %v274
    %v276 = vpop.f32.mrb[0].mxu0
    %v277 = vadd.f32 %v79, %v276
    %v278 = vpop.f32.mrb[0].mxu0
    %v279 = vadd.f32 %v75, %v278
    %v280 = vpop.f32.mrb[0].mxu0
    %v281 = vadd.f32 %v79, %v280
    %282 = vdwg.mxu0
    %283 = vst [vmem:[#allocation2] sm:$0xff] %v172
    %284 = vst [vmem:[#allocation2 + $0x8] sm:$0xff] %v174
    %285 = vst [vmem:[#allocation2 + $0x10] sm:$0xff] %v245
    %286 = vst [vmem:[#allocation2 + $0x18] sm:$0xff] %v247
    %287 = vst [vmem:[#allocation2 + $0x20] sm:$0xff] %v176
    %288 = vst [vmem:[#allocation2 + $0x28] sm:$0xff] %v178
    %289 = vst [vmem:[#allocation2 + $0x30] sm:$0xff] %v249
    %290 = vst [vmem:[#allocation2 + $0x38] sm:$0xff] %v251
    %291 = vst [vmem:[#allocation2 + $0x40] sm:$0xff] %v182
    %292 = vst [vmem:[#allocation2 + $0x48] sm:$0xff] %v184
    %293 = vst [vmem:[#allocation2 + $0x50] sm:$0xff] %v255
    %294 = vst [vmem:[#allocation2 + $0x58] sm:$0xff] %v257
    %295 = vst [vmem:[#allocation2 + $0x60] sm:$0xff] %v186
    %296 = vst [vmem:[#allocation2 + $0x68] sm:$0xff] %v188
    %297 = vst [vmem:[#allocation2 + $0x70] sm:$0xff] %v259
    %298 = vst [vmem:[#allocation2 + $0x78] sm:$0xff] %v261
    %299 = vst [vmem:[#allocation2 + $0x80] sm:$0xff] %v192
    %300 = vst [vmem:[#allocation2 + $0x88] sm:$0xff] %v194
    %301 = vst [vmem:[#allocation2 + $0x90] sm:$0xff] %v265
    %302 = vst [vmem:[#allocation2 + $0x98] sm:$0xff] %v267
    %303 = vst [vmem:[#allocation2 + $0xa0] sm:$0xff] %v196
    %304 = vst [vmem:[#allocation2 + $0xa8] sm:$0xff] %v198
    %305 = vst [vmem:[#allocation2 + $0xb0] sm:$0xff] %v269
    %306 = vst [vmem:[#allocation2 + $0xb8] sm:$0xff] %v271
    %307 = vst [vmem:[#allocation2 + $0xc0] sm:$0xff] %v202
    %308 = vst [vmem:[#allocation2 + $0xc8] sm:$0xff] %v204
    %309 = vst [vmem:[#allocation2 + $0xd0] sm:$0xff] %v275
    %310 = vst [vmem:[#allocation2 + $0xd8] sm:$0xff] %v277
    %311 = vst [vmem:[#allocation2 + $0xe0] sm:$0xff] %v206
    %312 = vst [vmem:[#allocation2 + $0xe8] sm:$0xff] %v208
    %313 = vst [vmem:[#allocation2 + $0xf0] sm:$0xff] %v279
    %314 = vst [vmem:[#allocation2 + $0xf8] sm:$0xff] %v281
    %v315 = vld [vmem:[#allocation3] sm:$0xff]
    %v316 = vld [vmem:[#allocation3 + $0x8] sm:$0xff]
    %v317 = vld [vmem:[#allocation3 + $0x10] sm:$0xff]
    %v318 = vld [vmem:[#allocation3 + $0x18] sm:$0xff]
    %v319 = vld [vmem:[#allocation3 + $0x20] sm:$0xff]
    %v320 = vld [vmem:[#allocation3 + $0x28] sm:$0xff]
    %v321 = vld [vmem:[#allocation3 + $0x30] sm:$0xff]
    %v322 = vld [vmem:[#allocation3 + $0x38] sm:$0xff]
    %v323 = vld [vmem:[#allocation3 + $0x40] sm:$0xff]
    %v324 = vld [vmem:[#allocation3 + $0x48] sm:$0xff]
    %v325 = vld [vmem:[#allocation3 + $0x50] sm:$0xff]
    %v326 = vld [vmem:[#allocation3 + $0x58] sm:$0xff]
    %v327 = vld [vmem:[#allocation3 + $0x60] sm:$0xff]
    %v328 = vld [vmem:[#allocation3 + $0x68] sm:$0xff]
    %v329 = vld [vmem:[#allocation3 + $0x70] sm:$0xff]
    %v330 = vld [vmem:[#allocation3 + $0x78] sm:$0xff]
    %v331 = vld [vmem:[#allocation3 + $0x80] sm:$0xff]
    %v332 = vld [vmem:[#allocation3 + $0x88] sm:$0xff]
    %v333 = vld [vmem:[#allocation3 + $0x90] sm:$0xff]
    %v334 = vld [vmem:[#allocation3 + $0x98] sm:$0xff]
    %v335 = vld [vmem:[#allocation3 + $0xa0] sm:$0xff]
    %v336 = vld [vmem:[#allocation3 + $0xa8] sm:$0xff]
    %v337 = vld [vmem:[#allocation3 + $0xb0] sm:$0xff]
    %v338 = vld [vmem:[#allocation3 + $0xb8] sm:$0xff]
    %v339 = vld [vmem:[#allocation3 + $0xc0] sm:$0xff]
    %v340 = vld [vmem:[#allocation3 + $0xc8] sm:$0xff]
    %v341 = vld [vmem:[#allocation3 + $0xd0] sm:$0xff]
    %v342 = vld [vmem:[#allocation3 + $0xd8] sm:$0xff]
    %v343 = vld [vmem:[#allocation3 + $0xe0] sm:$0xff]
    %v344 = vld [vmem:[#allocation3 + $0xe8] sm:$0xff]
    %v345 = vld [vmem:[#allocation3 + $0xf0] sm:$0xff]
    %v346 = vld [vmem:[#allocation3 + $0xf8] sm:$0xff]
    %s347 = smul.u32 0, 4
    %s348 = smul.addr %s347, 8
    %s349 = scalar_lea.vmem [#allocation2], %s348
    %v350 = vld [vmem:[%s349] sm:$0xff]
    %v351 = vld [vmem:[%s349 + $0x8] sm:$0xff]
    %v352 = vld [vmem:[%s349 + $0x10] sm:$0xff]
    %v353 = vld [vmem:[%s349 + $0x18] sm:$0xff]
    %v386 = vunpack.c.l.b16 %v315
    %v387 = vunpack.c.h.b16 %v315
    %v388 = vunpack.c.l.b16 %v316
    %v389 = vunpack.c.h.b16 %v316
    %v390 = vunpack.c.l.b16 %v317
    %v391 = vunpack.c.h.b16 %v317
    %v392 = vunpack.c.l.b16 %v318
    %v393 = vunpack.c.h.b16 %v318
    %v394 = vunpack.c.l.b16 %v319
    %v395 = vunpack.c.h.b16 %v319
    %v396 = vunpack.c.l.b16 %v320
    %v397 = vunpack.c.h.b16 %v320
    %v398 = vunpack.c.l.b16 %v321
    %v399 = vunpack.c.h.b16 %v321
    %v400 = vunpack.c.l.b16 %v322
    %v401 = vunpack.c.h.b16 %v322
    %v402 = vunpack.c.l.b16 %v323
    %v403 = vunpack.c.h.b16 %v323
    %v404 = vunpack.c.l.b16 %v324
    %v405 = vunpack.c.h.b16 %v324
    %v406 = vunpack.c.l.b16 %v325
    %v407 = vunpack.c.h.b16 %v325
    %v408 = vunpack.c.l.b16 %v326
    %v409 = vunpack.c.h.b16 %v326
    %v410 = vunpack.c.l.b16 %v327
    %v411 = vunpack.c.h.b16 %v327
    %v412 = vunpack.c.l.b16 %v328
    %v413 = vunpack.c.h.b16 %v328
    %v414 = vunpack.c.l.b16 %v329
    %v415 = vunpack.c.h.b16 %v329
    %v416 = vunpack.c.l.b16 %v330
    %v417 = vunpack.c.h.b16 %v330
    %v418 = vunpack.c.l.b16 %v331
    %v419 = vunpack.c.h.b16 %v331
    %v420 = vunpack.c.l.b16 %v332
    %v421 = vunpack.c.h.b16 %v332
    %v422 = vunpack.c.l.b16 %v333
    %v423 = vunpack.c.h.b16 %v333
    %v424 = vunpack.c.l.b16 %v334
    %v425 = vunpack.c.h.b16 %v334
    %v426 = vunpack.c.l.b16 %v335
    %v427 = vunpack.c.h.b16 %v335
    %v428 = vunpack.c.l.b16 %v336
    %v429 = vunpack.c.h.b16 %v336
    %v430 = vunpack.c.l.b16 %v337
    %v431 = vunpack.c.h.b16 %v337
    %v432 = vunpack.c.l.b16 %v338
    %v433 = vunpack.c.h.b16 %v338
    %v434 = vunpack.c.l.b16 %v339
    %v435 = vunpack.c.h.b16 %v339
    %v436 = vunpack.c.l.b16 %v340
    %v437 = vunpack.c.h.b16 %v340
    %v438 = vunpack.c.l.b16 %v341
    %v439 = vunpack.c.h.b16 %v341
    %v440 = vunpack.c.l.b16 %v342
    %v441 = vunpack.c.h.b16 %v342
    %v442 = vunpack.c.l.b16 %v343
    %v443 = vunpack.c.h.b16 %v343
    %v444 = vunpack.c.l.b16 %v344
    %v445 = vunpack.c.h.b16 %v344
    %v446 = vunpack.c.l.b16 %v345
    %v447 = vunpack.c.h.b16 %v345
    %v448 = vunpack.c.l.b16 %v346
    %v449 = vunpack.c.h.b16 %v346
    %v450 = vpack.c.b16 %v390, %v386
    %v451 = vpack.c.b16 %v391, %v387
    %v452 = vpack.c.b16 %v392, %v388
    %v453 = vpack.c.b16 %v393, %v389
    %v454 = vpack.c.b16 %v398, %v394
    %v455 = vpack.c.b16 %v399, %v395
    %v456 = vpack.c.b16 %v400, %v396
    %v457 = vpack.c.b16 %v401, %v397
    %v458 = vpack.c.b16 %v406, %v402
    %v459 = vpack.c.b16 %v407, %v403
    %v460 = vpack.c.b16 %v408, %v404
    %v461 = vpack.c.b16 %v409, %v405
    %v462 = vpack.c.b16 %v414, %v410
    %v463 = vpack.c.b16 %v415, %v411
    %v464 = vpack.c.b16 %v416, %v412
    %v465 = vpack.c.b16 %v417, %v413
    %v466 = vpack.c.b16 %v422, %v418
    %v467 = vpack.c.b16 %v423, %v419
    %v468 = vpack.c.b16 %v424, %v420
    %v469 = vpack.c.b16 %v425, %v421
    %v470 = vpack.c.b16 %v430, %v426
    %v471 = vpack.c.b16 %v431, %v427
    %v472 = vpack.c.b16 %v432, %v428
    %v473 = vpack.c.b16 %v433, %v429
    %v474 = vpack.c.b16 %v438, %v434
    %v475 = vpack.c.b16 %v439, %v435
    %v476 = vpack.c.b16 %v440, %v436
    %v477 = vpack.c.b16 %v441, %v437
    %v478 = vpack.c.b16 %v446, %v442
    %v479 = vpack.c.b16 %v447, %v443
    %v480 = vpack.c.b16 %v448, %v444
    %v481 = vpack.c.b16 %v449, %v445
    %514 = vmatprep.subr.bf16.mxu0 %v451
    %515 = vmatpush1.bf16.msra.mxu0 %v450
    %516 = vmatprep.subr.bf16.mxu0 %v455
    %517 = vmatpush1.bf16.msra.mxu0 %v454
    %518 = vmatprep.subr.bf16.mxu0 %v459
    %519 = vmatpush1.bf16.msra.mxu0 %v458
    %520 = vmatprep.subr.bf16.mxu0 %v463
    %521 = vmatpush1.bf16.msra.mxu0 %v462
    %522 = vmatprep.subr.bf16.mxu0 %v467
    %523 = vmatpush1.bf16.msra.mxu0 %v466
    %524 = vmatprep.subr.bf16.mxu0 %v471
    %525 = vmatpush1.bf16.msra.mxu0 %v470
    %526 = vmatprep.subr.bf16.mxu0 %v475
    %527 = vmatpush1.bf16.msra.mxu0 %v474
    %528 = vmatprep.subr.bf16.mxu0 %v479
    %529 = vmatpush1.bf16.msra.mxu0 %v478
    %530 = vmatprep.subr.bf16.mxu0 0
    %531 = vmatpush1.bf16.msra.mxu0 0
    %532 = vmatprep.subr.bf16.mxu0 0
    %533 = vmatpush1.bf16.msra.mxu0 0
    %534 = vmatprep.subr.bf16.mxu0 0
    %535 = vmatpush1.bf16.msra.mxu0 0
    %536 = vmatprep.subr.bf16.mxu0 0
    %537 = vmatpush1.bf16.msra.mxu0 0
    %538 = vmatprep.subr.bf16.mxu0 0
    %539 = vmatpush1.bf16.msra.mxu0 0
    %540 = vmatprep.subr.bf16.mxu0 0
    %541 = vmatpush1.bf16.msra.mxu0 0
    %542 = vmatprep.subr.bf16.mxu0 0
    %543 = vmatpush1.bf16.msra.mxu0 0
    %544 = vmatprep.subr.bf16.mxu0 0
    %545 = vmatpush1.bf16.msra.mxu0 0
    %546 = vmatprep.mubr.bf16.mxu0 0
    %547 = vmatmul.mubr.bf16.gmra.mrb[0].mxu0 0
    %v548 = vpop.f32.mrb[0].mxu0
    %v549 = vadd.f32 0.0, %v548
    %v550 = vpop.f32.mrb[0].mxu0
    %v551 = vadd.f32 0.0, %v550
    %v552 = vpop.f32.mrb[0].mxu0
    %v553 = vpop.f32.mrb[0].mxu0
    %554 = vdwg.mxu0
    %555 = vmatprep.subr.bf16.mxu0 %v453
    %556 = vmatpush1.bf16.msra.mxu0 %v452
    %557 = vmatprep.subr.bf16.mxu0 %v457
    %558 = vmatpush1.bf16.msra.mxu0 %v456
    %559 = vmatprep.subr.bf16.mxu0 %v461
    %560 = vmatpush1.bf16.msra.mxu0 %v460
    %561 = vmatprep.subr.bf16.mxu0 %v465
    %562 = vmatpush1.bf16.msra.mxu0 %v464
    %563 = vmatprep.subr.bf16.mxu0 %v469
    %564 = vmatpush1.bf16.msra.mxu0 %v468
    %565 = vmatprep.subr.bf16.mxu0 %v473
    %566 = vmatpush1.bf16.msra.mxu0 %v472
    %567 = vmatprep.subr.bf16.mxu0 %v477
    %568 = vmatpush1.bf16.msra.mxu0 %v476
    %569 = vmatprep.subr.bf16.mxu0 %v481
    %570 = vmatpush1.bf16.msra.mxu0 %v480
    %571 = vmatprep.subr.bf16.mxu0 0
    %572 = vmatpush1.bf16.msra.mxu0 0
    %573 = vmatprep.subr.bf16.mxu0 0
    %574 = vmatpush1.bf16.msra.mxu0 0
    %575 = vmatprep.subr.bf16.mxu0 0
    %576 = vmatpush1.bf16.msra.mxu0 0
    %577 = vmatprep.subr.bf16.mxu0 0
    %578 = vmatpush1.bf16.msra.mxu0 0
    %579 = vmatprep.subr.bf16.mxu0 0
    %580 = vmatpush1.bf16.msra.mxu0 0
    %581 = vmatprep.subr.bf16.mxu0 0
    %582 = vmatpush1.bf16.msra.mxu0 0
    %583 = vmatprep.subr.bf16.mxu0 0
    %584 = vmatpush1.bf16.msra.mxu0 0
    %585 = vmatprep.subr.bf16.mxu0 0
    %586 = vmatpush1.bf16.msra.mxu0 0
    %587 = vmatprep.mubr.bf16.mxu0 0
    %588 = vmatmul.mubr.bf16.gmra.mrb[0].mxu0 0
    %v589 = vpop.f32.mrb[0].mxu0
    %v590 = vadd.f32 0.0, %v589
    %v591 = vpop.f32.mrb[0].mxu0
    %v592 = vadd.f32 0.0, %v591
    %v593 = vpop.f32.mrb[0].mxu0
    %v594 = vpop.f32.mrb[0].mxu0
    %595 = vdwg.mxu0
    %v596 = vadd.f32 %v350, %v549
    %v597 = vadd.f32 %v351, %v551
    %v598 = vadd.f32 %v352, %v590
    %v599 = vadd.f32 %v353, %v592
    %v600 = vxor.u32 %v596, 2147483648
    %v601 = vmul.f32 %v600, 1.442695
    %v602 = vpow.pop %v601
    %v603 = vadd.f32 %v602, 1.0
    %v604 = vrcp.pop %v603
    %v605 = vmul.f32 1.0, %v604
    %v606 = vxor.u32 %v597, 2147483648
    %v607 = vmul.f32 %v606, 1.442695
    %v608 = vpow.pop %v607
    %v609 = vadd.f32 %v608, 1.0
    %v610 = vrcp.pop %v609
    %v611 = vmul.f32 1.0, %v610
    %v612 = vtanh.pop %v598
    %v613 = vxor.u32 %v599, 2147483648
    %v614 = vmul.f32 %v613, 1.442695
    %v615 = vpow.pop %v614
    %v616 = vadd.f32 %v615, 1.0
    %v617 = vrcp.pop %v616
    %v618 = vmul.f32 1.0, %v617
    %v619 = vmul.f32 %v611, 0.0
    %v620 = vmul.f32 %v605, %v612
    %v621 = vadd.f32 %v619, %v620
    %v622 = vtanh.pop %v621
    %v623 = vmul.f32 %v618, %v622
    %s624 = smul.u32 1, 4
    %s625 = smul.addr %s624, 8
    %s626 = scalar_lea.vmem [#allocation2], %s625
    %v627 = vld [vmem:[%s626] sm:$0xff]
    %v628 = vld [vmem:[%s626 + $0x8] sm:$0xff]
    %v629 = vld [vmem:[%s626 + $0x10] sm:$0xff]
    %v630 = vld [vmem:[%s626 + $0x18] sm:$0xff]
    %v631 = vpack.c.bf16 %v623, %v623
    %632 = vmatprep.subr.bf16.mxu0 %v451
    %633 = vmatpush1.bf16.msra.mxu0 %v450
    %634 = vmatprep.subr.bf16.mxu0 %v455
    %635 = vmatpush1.bf16.msra.mxu0 %v454
    %636 = vmatprep.subr.bf16.mxu0 %v459
    %637 = vmatpush1.bf16.msra.mxu0 %v458
    %638 = vmatprep.subr.bf16.mxu0 %v463
    %639 = vmatpush1.bf16.msra.mxu0 %v462
    %640 = vmatprep.subr.bf16.mxu0 %v467
    %641 = vmatpush1.bf16.msra.mxu0 %v466
    %642 = vmatprep.subr.bf16.mxu0 %v471
    %643 = vmatpush1.bf16.msra.mxu0 %v470
    %644 = vmatprep.subr.bf16.mxu0 %v475
    %645 = vmatpush1.bf16.msra.mxu0 %v474
    %646 = vmatprep.subr.bf16.mxu0 %v479
    %647 = vmatpush1.bf16.msra.mxu0 %v478
    %648 = vmatprep.subr.bf16.mxu0 0
    %649 = vmatpush1.bf16.msra.mxu0 0
    %650 = vmatprep.subr.bf16.mxu0 0
    %651 = vmatpush1.bf16.msra.mxu0 0
    %652 = vmatprep.subr.bf16.mxu0 0
    %653 = vmatpush1.bf16.msra.mxu0 0
    %654 = vmatprep.subr.bf16.mxu0 0
    %655 = vmatpush1.bf16.msra.mxu0 0
    %656 = vmatprep.subr.bf16.mxu0 0
    %657 = vmatpush1.bf16.msra.mxu0 0
    %658 = vmatprep.subr.bf16.mxu0 0
    %659 = vmatpush1.bf16.msra.mxu0 0
    %660 = vmatprep.subr.bf16.mxu0 0
    %661 = vmatpush1.bf16.msra.mxu0 0
    %662 = vmatprep.subr.bf16.mxu0 0
    %663 = vmatpush1.bf16.msra.mxu0 0
    %664 = vmatprep.mubr.bf16.mxu0 0
    %665 = vmatmul.mubr.bf16.gmra.mrb[0].mxu0 %v631
    %v666 = vpop.f32.mrb[0].mxu0
    %v667 = vadd.f32 0.0, %v666
    %v668 = vpop.f32.mrb[0].mxu0
    %v669 = vadd.f32 0.0, %v668
    %v670 = vpop.f32.mrb[0].mxu0
    %v671 = vpop.f32.mrb[0].mxu0
    %672 = vdwg.mxu0
    %673 = vmatprep.subr.bf16.mxu0 %v453
    %674 = vmatpush1.bf16.msra.mxu0 %v452
    %675 = vmatprep.subr.bf16.mxu0 %v457
    %676 = vmatpush1.bf16.msra.mxu0 %v456
    %677 = vmatprep.subr.bf16.mxu0 %v461
    %678 = vmatpush1.bf16.msra.mxu0 %v460
    %679 = vmatprep.subr.bf16.mxu0 %v465
    %680 = vmatpush1.bf16.msra.mxu0 %v464
    %681 = vmatprep.subr.bf16.mxu0 %v469
    %682 = vmatpush1.bf16.msra.mxu0 %v468
    %683 = vmatprep.subr.bf16.mxu0 %v473
    %684 = vmatpush1.bf16.msra.mxu0 %v472
    %685 = vmatprep.subr.bf16.mxu0 %v477
    %686 = vmatpush1.bf16.msra.mxu0 %v476
    %687 = vmatprep.subr.bf16.mxu0 %v481
    %688 = vmatpush1.bf16.msra.mxu0 %v480
    %689 = vmatprep.subr.bf16.mxu0 0
    %690 = vmatpush1.bf16.msra.mxu0 0
    %691 = vmatprep.subr.bf16.mxu0 0
    %692 = vmatpush1.bf16.msra.mxu0 0
    %693 = vmatprep.subr.bf16.mxu0 0
    %694 = vmatpush1.bf16.msra.mxu0 0
    %695 = vmatprep.subr.bf16.mxu0 0
    %696 = vmatpush1.bf16.msra.mxu0 0
    %697 = vmatprep.subr.bf16.mxu0 0
    %698 = vmatpush1.bf16.msra.mxu0 0
    %699 = vmatprep.subr.bf16.mxu0 0
    %700 = vmatpush1.bf16.msra.mxu0 0
    %701 = vmatprep.subr.bf16.mxu0 0
    %702 = vmatpush1.bf16.msra.mxu0 0
    %703 = vmatprep.subr.bf16.mxu0 0
    %704 = vmatpush1.bf16.msra.mxu0 0
    %705 = vmatprep.mubr.bf16.mxu0 0
    %706 = vmatmul.mubr.bf16.gmra.mrb[0].mxu0 %v631
    %v707 = vpop.f32.mrb[0].mxu0
    %v708 = vadd.f32 0.0, %v707
    %v709 = vpop.f32.mrb[0].mxu0
    %v710 = vadd.f32 0.0, %v709
    %v711 = vpop.f32.mrb[0].mxu0
    %v712 = vpop.f32.mrb[0].mxu0
    %713 = vdwg.mxu0
    %v714 = vadd.f32 %v627, %v667
    %v715 = vadd.f32 %v628, %v669
    %v716 = vadd.f32 %v629, %v708
    %v717 = vadd.f32 %v630, %v710
    %v718 = vxor.u32 %v714, 2147483648
    %v719 = vmul.f32 %v718, 1.442695
    %v720 = vpow.pop %v719
    %v721 = vadd.f32 %v720, 1.0
    %v722 = vrcp.pop %v721
    %v723 = vmul.f32 1.0, %v722
    %v724 = vxor.u32 %v715, 2147483648
    %v725 = vmul.f32 %v724, 1.442695
    %v726 = vpow.pop %v725
    %v727 = vadd.f32 %v726, 1.0
    %v728 = vrcp.pop %v727
    %v729 = vmul.f32 1.0, %v728
    %v730 = vtanh.pop %v716
    %v731 = vxor.u32 %v717, 2147483648
    %v732 = vmul.f32 %v731, 1.442695
    %v733 = vpow.pop %v732
    %v734 = vadd.f32 %v733, 1.0
    %v735 = vrcp.pop %v734
    %v736 = vmul.f32 1.0, %v735
    %v737 = vmul.f32 %v621, %v729
    %v738 = vmul.f32 %v723, %v730
    %v739 = vadd.f32 %v737, %v738
    %v740 = vtanh.pop %v739
    %v741 = vmul.f32 %v736, %v740
    %s742 = smul.u32 2, 4
    %s743 = smul.addr %s742, 8
    %s744 = scalar_lea.vmem [#allocation2], %s743
    %v745 = vld [vmem:[%s744] sm:$0xff]
    %v746 = vld [vmem:[%s744 + $0x8] sm:$0xff]
    %v747 = vld [vmem:[%s744 + $0x10] sm:$0xff]
    %v748 = vld [vmem:[%s744 + $0x18] sm:$0xff]
    %v749 = vpack.c.bf16 %v741, %v741
    %750 = vmatprep.subr.bf16.mxu0 %v451
    %751 = vmatpush1.bf16.msra.mxu0 %v450
    %752 = vmatprep.subr.bf16.mxu0 %v455
    %753 = vmatpush1.bf16.msra.mxu0 %v454
    %754 = vmatprep.subr.bf16.mxu0 %v459
    %755 = vmatpush1.bf16.msra.mxu0 %v458
    %756 = vmatprep.subr.bf16.mxu0 %v463
    %757 = vmatpush1.bf16.msra.mxu0 %v462
    %758 = vmatprep.subr.bf16.mxu0 %v467
    %759 = vmatpush1.bf16.msra.mxu0 %v466
    %760 = vmatprep.subr.bf16.mxu0 %v471
    %761 = vmatpush1.bf16.msra.mxu0 %v470
    %762 = vmatprep.subr.bf16.mxu0 %v475
    %763 = vmatpush1.bf16.msra.mxu0 %v474
    %764 = vmatprep.subr.bf16.mxu0 %v479
    %765 = vmatpush1.bf16.msra.mxu0 %v478
    %766 = vmatprep.subr.bf16.mxu0 0
    %767 = vmatpush1.bf16.msra.mxu0 0
    %768 = vmatprep.subr.bf16.mxu0 0
    %769 = vmatpush1.bf16.msra.mxu0 0
    %770 = vmatprep.subr.bf16.mxu0 0
    %771 = vmatpush1.bf16.msra.mxu0 0
    %772 = vmatprep.subr.bf16.mxu0 0
    %773 = vmatpush1.bf16.msra.mxu0 0
    %774 = vmatprep.subr.bf16.mxu0 0
    %775 = vmatpush1.bf16.msra.mxu0 0
    %776 = vmatprep.subr.bf16.mxu0 0
    %777 = vmatpush1.bf16.msra.mxu0 0
    %778 = vmatprep.subr.bf16.mxu0 0
    %779 = vmatpush1.bf16.msra.mxu0 0
    %780 = vmatprep.subr.bf16.mxu0 0
    %781 = vmatpush1.bf16.msra.mxu0 0
    %782 = vmatprep.mubr.bf16.mxu0 0
    %783 = vmatmul.mubr.bf16.gmra.mrb[0].mxu0 %v749
    %v784 = vpop.f32.mrb[0].mxu0
    %v785 = vadd.f32 0.0, %v784
    %v786 = vpop.f32.mrb[0].mxu0
    %v787 = vadd.f32 0.0, %v786
    %v788 = vpop.f32.mrb[0].mxu0
    %v789 = vpop.f32.mrb[0].mxu0
    %790 = vdwg.mxu0
    %791 = vmatprep.subr.bf16.mxu0 %v453
    %792 = vmatpush1.bf16.msra.mxu0 %v452
    %793 = vmatprep.subr.bf16.mxu0 %v457
    %794 = vmatpush1.bf16.msra.mxu0 %v456
    %795 = vmatprep.subr.bf16.mxu0 %v461
    %796 = vmatpush1.bf16.msra.mxu0 %v460
    %797 = vmatprep.subr.bf16.mxu0 %v465
    %798 = vmatpush1.bf16.msra.mxu0 %v464
    %799 = vmatprep.subr.bf16.mxu0 %v469
    %800 = vmatpush1.bf16.msra.mxu0 %v468
    %801 = vmatprep.subr.bf16.mxu0 %v473
    %802 = vmatpush1.bf16.msra.mxu0 %v472
    %803 = vmatprep.subr.bf16.mxu0 %v477
    %804 = vmatpush1.bf16.msra.mxu0 %v476
    %805 = vmatprep.subr.bf16.mxu0 %v481
    %806 = vmatpush1.bf16.msra.mxu0 %v480
    %807 = vmatprep.subr.bf16.mxu0 0
    %808 = vmatpush1.bf16.msra.mxu0 0
    %809 = vmatprep.subr.bf16.mxu0 0
    %810 = vmatpush1.bf16.msra.mxu0 0
    %811 = vmatprep.subr.bf16.mxu0 0
    %812 = vmatpush1.bf16.msra.mxu0 0
    %813 = vmatprep.subr.bf16.mxu0 0
    %814 = vmatpush1.bf16.msra.mxu0 0
    %815 = vmatprep.subr.bf16.mxu0 0
    %816 = vmatpush1.bf16.msra.mxu0 0
    %817 = vmatprep.subr.bf16.mxu0 0
    %818 = vmatpush1.bf16.msra.mxu0 0
    %819 = vmatprep.subr.bf16.mxu0 0
    %820 = vmatpush1.bf16.msra.mxu0 0
    %821 = vmatprep.subr.bf16.mxu0 0
    %822 = vmatpush1.bf16.msra.mxu0 0
    %823 = vmatprep.mubr.bf16.mxu0 0
    %824 = vmatmul.mubr.bf16.gmra.mrb[0].mxu0 %v749
    %v825 = vpop.f32.mrb[0].mxu0
    %v826 = vadd.f32 0.0, %v825
    %v827 = vpop.f32.mrb[0].mxu0
    %v828 = vadd.f32 0.0, %v827
    %v829 = vpop.f32.mrb[0].mxu0
    %v830 = vpop.f32.mrb[0].mxu0
    %831 = vdwg.mxu0
    %v832 = vadd.f32 %v745, %v785
    %v833 = vadd.f32 %v746, %v787
    %v834 = vadd.f32 %v747, %v826
    %v835 = vadd.f32 %v748, %v828
    %v836 = vxor.u32 %v832, 2147483648
    %v837 = vmul.f32 %v836, 1.442695
    %v838 = vpow.pop %v837
    %v839 = vadd.f32 %v838, 1.0
    %v840 = vrcp.pop %v839
    %v841 = vmul.f32 1.0, %v840
    %v842 = vxor.u32 %v833, 2147483648
    %v843 = vmul.f32 %v842, 1.442695
    %v844 = vpow.pop %v843
    %v845 = vadd.f32 %v844, 1.0
    %v846 = vrcp.pop %v845
    %v847 = vmul.f32 1.0, %v846
    %v848 = vtanh.pop %v834
    %v849 = vxor.u32 %v835, 2147483648
    %v850 = vmul.f32 %v849, 1.442695
    %v851 = vpow.pop %v850
    %v852 = vadd.f32 %v851, 1.0
    %v853 = vrcp.pop %v852
    %v854 = vmul.f32 1.0, %v853
    %v855 = vmul.f32 %v739, %v847
    %v856 = vmul.f32 %v841, %v848
    %v857 = vadd.f32 %v855, %v856
    %v858 = vtanh.pop %v857
    %v859 = vmul.f32 %v854, %v858
    %s860 = smul.u32 3, 4
    %s861 = smul.addr %s860, 8
    %s862 = scalar_lea.vmem [#allocation2], %s861
    %v863 = vld [vmem:[%s862] sm:$0xff]
    %v864 = vld [vmem:[%s862 + $0x8] sm:$0xff]
    %v865 = vld [vmem:[%s862 + $0x10] sm:$0xff]
    %v866 = vld [vmem:[%s862 + $0x18] sm:$0xff]
    %v867 = vpack.c.bf16 %v859, %v859
    %868 = vmatprep.subr.bf16.mxu0 %v451
    %869 = vmatpush1.bf16.msra.mxu0 %v450
    %870 = vmatprep.subr.bf16.mxu0 %v455
    %871 = vmatpush1.bf16.msra.mxu0 %v454
    %872 = vmatprep.subr.bf16.mxu0 %v459
    %873 = vmatpush1.bf16.msra.mxu0 %v458
    %874 = vmatprep.subr.bf16.mxu0 %v463
    %875 = vmatpush1.bf16.msra.mxu0 %v462
    %876 = vmatprep.subr.bf16.mxu0 %v467
    %877 = vmatpush1.bf16.msra.mxu0 %v466
    %878 = vmatprep.subr.bf16.mxu0 %v471
    %879 = vmatpush1.bf16.msra.mxu0 %v470
    %880 = vmatprep.subr.bf16.mxu0 %v475
    %881 = vmatpush1.bf16.msra.mxu0 %v474
    %882 = vmatprep.subr.bf16.mxu0 %v479
    %883 = vmatpush1.bf16.msra.mxu0 %v478
    %884 = vmatprep.subr.bf16.mxu0 0
    %885 = vmatpush1.bf16.msra.mxu0 0
    %886 = vmatprep.subr.bf16.mxu0 0
    %887 = vmatpush1.bf16.msra.mxu0 0
    %888 = vmatprep.subr.bf16.mxu0 0
    %889 = vmatpush1.bf16.msra.mxu0 0
    %890 = vmatprep.subr.bf16.mxu0 0
    %891 = vmatpush1.bf16.msra.mxu0 0
    %892 = vmatprep.subr.bf16.mxu0 0
    %893 = vmatpush1.bf16.msra.mxu0 0
    %894 = vmatprep.subr.bf16.mxu0 0
    %895 = vmatpush1.bf16.msra.mxu0 0
    %896 = vmatprep.subr.bf16.mxu0 0
    %897 = vmatpush1.bf16.msra.mxu0 0
    %898 = vmatprep.subr.bf16.mxu0 0
    %899 = vmatpush1.bf16.msra.mxu0 0
    %900 = vmatprep.mubr.bf16.mxu0 0
    %901 = vmatmul.mubr.bf16.gmra.mrb[0].mxu0 %v867
    %v902 = vpop.f32.mrb[0].mxu0
    %v903 = vadd.f32 0.0, %v902
    %v904 = vpop.f32.mrb[0].mxu0
    %v905 = vadd.f32 0.0, %v904
    %v906 = vpop.f32.mrb[0].mxu0
    %v907 = vpop.f32.mrb[0].mxu0
    %908 = vdwg.mxu0
    %909 = vmatprep.subr.bf16.mxu0 %v453
    %910 = vmatpush1.bf16.msra.mxu0 %v452
    %911 = vmatprep.subr.bf16.mxu0 %v457
    %912 = vmatpush1.bf16.msra.mxu0 %v456
    %913 = vmatprep.subr.bf16.mxu0 %v461
    %914 = vmatpush1.bf16.msra.mxu0 %v460
    %915 = vmatprep.subr.bf16.mxu0 %v465
    %916 = vmatpush1.bf16.msra.mxu0 %v464
    %917 = vmatprep.subr.bf16.mxu0 %v469
    %918 = vmatpush1.bf16.msra.mxu0 %v468
    %919 = vmatprep.subr.bf16.mxu0 %v473
    %920 = vmatpush1.bf16.msra.mxu0 %v472
    %921 = vmatprep.subr.bf16.mxu0 %v477
    %922 = vmatpush1.bf16.msra.mxu0 %v476
    %923 = vmatprep.subr.bf16.mxu0 %v481
    %924 = vmatpush1.bf16.msra.mxu0 %v480
    %925 = vmatprep.subr.bf16.mxu0 0
    %926 = vmatpush1.bf16.msra.mxu0 0
    %927 = vmatprep.subr.bf16.mxu0 0
    %928 = vmatpush1.bf16.msra.mxu0 0
    %929 = vmatprep.subr.bf16.mxu0 0
    %930 = vmatpush1.bf16.msra.mxu0 0
    %931 = vmatprep.subr.bf16.mxu0 0
    %932 = vmatpush1.bf16.msra.mxu0 0
    %933 = vmatprep.subr.bf16.mxu0 0
    %934 = vmatpush1.bf16.msra.mxu0 0
    %935 = vmatprep.subr.bf16.mxu0 0
    %936 = vmatpush1.bf16.msra.mxu0 0
    %937 = vmatprep.subr.bf16.mxu0 0
    %938 = vmatpush1.bf16.msra.mxu0 0
    %939 = vmatprep.subr.bf16.mxu0 0
    %940 = vmatpush1.bf16.msra.mxu0 0
    %941 = vmatprep.mubr.bf16.mxu0 0
    %942 = vmatmul.mubr.bf16.gmra.mrb[0].mxu0 %v867
    %v943 = vpop.f32.mrb[0].mxu0
    %v944 = vadd.f32 0.0, %v943
    %v945 = vpop.f32.mrb[0].mxu0
    %v946 = vadd.f32 0.0, %v945
    %v947 = vpop.f32.mrb[0].mxu0
    %v948 = vpop.f32.mrb[0].mxu0
    %949 = vdwg.mxu0
    %v950 = vadd.f32 %v863, %v903
    %v951 = vadd.f32 %v864, %v905
    %v952 = vadd.f32 %v865, %v944
    %v953 = vadd.f32 %v866, %v946
    %v954 = vxor.u32 %v950, 2147483648
    %v955 = vmul.f32 %v954, 1.442695
    %v956 = vpow.pop %v955
    %v957 = vadd.f32 %v956, 1.0
    %v958 = vrcp.pop %v957
    %v959 = vmul.f32 1.0, %v958
    %v960 = vxor.u32 %v951, 2147483648
    %v961 = vmul.f32 %v960, 1.442695
    %v962 = vpow.pop %v961
    %v963 = vadd.f32 %v962, 1.0
    %v964 = vrcp.pop %v963
    %v965 = vmul.f32 1.0, %v964
    %v966 = vtanh.pop %v952
    %v967 = vxor.u32 %v953, 2147483648
    %v968 = vmul.f32 %v967, 1.442695
    %v969 = vpow.pop %v968
    %v970 = vadd.f32 %v969, 1.0
    %v971 = vrcp.pop %v970
    %v972 = vmul.f32 1.0, %v971
    %v973 = vmul.f32 %v857, %v965
    %v974 = vmul.f32 %v959, %v966
    %v975 = vadd.f32 %v973, %v974
    %v976 = vtanh.pop %v975
    %v977 = vmul.f32 %v972, %v976
    %s978 = smul.u32 4, 4
    %s979 = smul.addr %s978, 8
    %s980 = scalar_lea.vmem [#allocation2], %s979
    %v981 = vld [vmem:[%s980] sm:$0xff]
    %v982 = vld [vmem:[%s980 + $0x8] sm:$0xff]
    %v983 = vld [vmem:[%s980 + $0x10] sm:$0xff]
    %v984 = vld [vmem:[%s980 + $0x18] sm:$0xff]
    %v985 = vpack.c.bf16 %v977, %v977
    %986 = vmatprep.subr.bf16.mxu0 %v451
    %987 = vmatpush1.bf16.msra.mxu0 %v450
    %988 = vmatprep.subr.bf16.mxu0 %v455
    %989 = vmatpush1.bf16.msra.mxu0 %v454
    %990 = vmatprep.subr.bf16.mxu0 %v459
    %991 = vmatpush1.bf16.msra.mxu0 %v458
    %992 = vmatprep.subr.bf16.mxu0 %v463
    %993 = vmatpush1.bf16.msra.mxu0 %v462
    %994 = vmatprep.subr.bf16.mxu0 %v467
    %995 = vmatpush1.bf16.msra.mxu0 %v466
    %996 = vmatprep.subr.bf16.mxu0 %v471
    %997 = vmatpush1.bf16.msra.mxu0 %v470
    %998 = vmatprep.subr.bf16.mxu0 %v475
    %999 = vmatpush1.bf16.msra.mxu0 %v474
    %1000 = vmatprep.subr.bf16.mxu0 %v479
    %1001 = vmatpush1.bf16.msra.mxu0 %v478
    %1002 = vmatprep.subr.bf16.mxu0 0
    %1003 = vmatpush1.bf16.msra.mxu0 0
    %1004 = vmatprep.subr.bf16.mxu0 0
    %1005 = vmatpush1.bf16.msra.mxu0 0
    %1006 = vmatprep.subr.bf16.mxu0 0
    %1007 = vmatpush1.bf16.msra.mxu0 0
    %1008 = vmatprep.subr.bf16.mxu0 0
    %1009 = vmatpush1.bf16.msra.mxu0 0
    %1010 = vmatprep.subr.bf16.mxu0 0
    %1011 = vmatpush1.bf16.msra.mxu0 0
    %1012 = vmatprep.subr.bf16.mxu0 0
    %1013 = vmatpush1.bf16.msra.mxu0 0
    %1014 = vmatprep.subr.bf16.mxu0 0
    %1015 = vmatpush1.bf16.msra.mxu0 0
    %1016 = vmatprep.subr.bf16.mxu0 0
    %1017 = vmatpush1.bf16.msra.mxu0 0
    %1018 = vmatprep.mubr.bf16.mxu0 0
    %1019 = vmatmul.mubr.bf16.gmra.mrb[0].mxu0 %v985
    %v1020 = vpop.f32.mrb[0].mxu0
    %v1021 = vadd.f32 0.0, %v1020
    %v1022 = vpop.f32.mrb[0].mxu0
    %v1023 = vadd.f32 0.0, %v1022
    %v1024 = vpop.f32.mrb[0].mxu0
    %v1025 = vpop.f32.mrb[0].mxu0
    %1026 = vdwg.mxu0
    %1027 = vmatprep.subr.bf16.mxu0 %v453
    %1028 = vmatpush1.bf16.msra.mxu0 %v452
    %1029 = vmatprep.subr.bf16.mxu0 %v457
    %1030 = vmatpush1.bf16.msra.mxu0 %v456
    %1031 = vmatprep.subr.bf16.mxu0 %v461
    %1032 = vmatpush1.bf16.msra.mxu0 %v460
    %1033 = vmatprep.subr.bf16.mxu0 %v465
    %1034 = vmatpush1.bf16.msra.mxu0 %v464
    %1035 = vmatprep.subr.bf16.mxu0 %v469
    %1036 = vmatpush1.bf16.msra.mxu0 %v468
    %1037 = vmatprep.subr.bf16.mxu0 %v473
    %1038 = vmatpush1.bf16.msra.mxu0 %v472
    %1039 = vmatprep.subr.bf16.mxu0 %v477
    %1040 = vmatpush1.bf16.msra.mxu0 %v476
    %1041 = vmatprep.subr.bf16.mxu0 %v481
    %1042 = vmatpush1.bf16.msra.mxu0 %v480
    %1043 = vmatprep.subr.bf16.mxu0 0
    %1044 = vmatpush1.bf16.msra.mxu0 0
    %1045 = vmatprep.subr.bf16.mxu0 0
    %1046 = vmatpush1.bf16.msra.mxu0 0
    %1047 = vmatprep.subr.bf16.mxu0 0
    %1048 = vmatpush1.bf16.msra.mxu0 0
    %1049 = vmatprep.subr.bf16.mxu0 0
    %1050 = vmatpush1.bf16.msra.mxu0 0
    %1051 = vmatprep.subr.bf16.mxu0 0
    %1052 = vmatpush1.bf16.msra.mxu0 0
    %1053 = vmatprep.subr.bf16.mxu0 0
    %1054 = vmatpush1.bf16.msra.mxu0 0
    %1055 = vmatprep.subr.bf16.mxu0 0
    %1056 = vmatpush1.bf16.msra.mxu0 0
    %1057 = vmatprep.subr.bf16.mxu0 0
    %1058 = vmatpush1.bf16.msra.mxu0 0
    %1059 = vmatprep.mubr.bf16.mxu0 0
    %1060 = vmatmul.mubr.bf16.gmra.mrb[0].mxu0 %v985
    %v1061 = vpop.f32.mrb[0].mxu0
    %v1062 = vadd.f32 0.0, %v1061
    %v1063 = vpop.f32.mrb[0].mxu0
    %v1064 = vadd.f32 0.0, %v1063
    %v1065 = vpop.f32.mrb[0].mxu0
    %v1066 = vpop.f32.mrb[0].mxu0
    %1067 = vdwg.mxu0
    %v1068 = vadd.f32 %v981, %v1021
    %v1069 = vadd.f32 %v982, %v1023
    %v1070 = vadd.f32 %v983, %v1062
    %v1071 = vadd.f32 %v984, %v1064
    %v1072 = vxor.u32 %v1068, 2147483648
    %v1073 = vmul.f32 %v1072, 1.442695
    %v1074 = vpow.pop %v1073
    %v1075 = vadd.f32 %v1074, 1.0
    %v1076 = vrcp.pop %v1075
    %v1077 = vmul.f32 1.0, %v1076
    %v1078 = vxor.u32 %v1069, 2147483648
    %v1079 = vmul.f32 %v1078, 1.442695
    %v1080 = vpow.pop %v1079
    %v1081 = vadd.f32 %v1080, 1.0
    %v1082 = vrcp.pop %v1081
    %v1083 = vmul.f32 1.0, %v1082
    %v1084 = vtanh.pop %v1070
    %v1085 = vxor.u32 %v1071, 2147483648
    %v1086 = vmul.f32 %v1085, 1.442695
    %v1087 = vpow.pop %v1086
    %v1088 = vadd.f32 %v1087, 1.0
    %v1089 = vrcp.pop %v1088
    %v1090 = vmul.f32 1.0, %v1089
    %v1091 = vmul.f32 %v975, %v1083
    %v1092 = vmul.f32 %v1077, %v1084
    %v1093 = vadd.f32 %v1091, %v1092
    %v1094 = vtanh.pop %v1093
    %v1095 = vmul.f32 %v1090, %v1094
    %s1096 = smul.u32 5, 4
    %s1097 = smul.addr %s1096, 8
    %s1098 = scalar_lea.vmem [#allocation2], %s1097
    %v1099 = vld [vmem:[%s1098] sm:$0xff]
    %v1100 = vld [vmem:[%s1098 + $0x8] sm:$0xff]
    %v1101 = vld [vmem:[%s1098 + $0x10] sm:$0xff]
    %v1102 = vld [vmem:[%s1098 + $0x18] sm:$0xff]
    %v1103 = vpack.c.bf16 %v1095, %v1095
    %1104 = vmatprep.subr.bf16.mxu0 %v451
    %1105 = vmatpush1.bf16.msra.mxu0 %v450
    %1106 = vmatprep.subr.bf16.mxu0 %v455
    %1107 = vmatpush1.bf16.msra.mxu0 %v454
    %1108 = vmatprep.subr.bf16.mxu0 %v459
    %1109 = vmatpush1.bf16.msra.mxu0 %v458
    %1110 = vmatprep.subr.bf16.mxu0 %v463
    %1111 = vmatpush1.bf16.msra.mxu0 %v462
    %1112 = vmatprep.subr.bf16.mxu0 %v467
    %1113 = vmatpush1.bf16.msra.mxu0 %v466
    %1114 = vmatprep.subr.bf16.mxu0 %v471
    %1115 = vmatpush1.bf16.msra.mxu0 %v470
    %1116 = vmatprep.subr.bf16.mxu0 %v475
    %1117 = vmatpush1.bf16.msra.mxu0 %v474
    %1118 = vmatprep.subr.bf16.mxu0 %v479
    %1119 = vmatpush1.bf16.msra.mxu0 %v478
    %1120 = vmatprep.subr.bf16.mxu0 0
    %1121 = vmatpush1.bf16.msra.mxu0 0
    %1122 = vmatprep.subr.bf16.mxu0 0
    %1123 = vmatpush1.bf16.msra.mxu0 0
    %1124 = vmatprep.subr.bf16.mxu0 0
    %1125 = vmatpush1.bf16.msra.mxu0 0
    %1126 = vmatprep.subr.bf16.mxu0 0
    %1127 = vmatpush1.bf16.msra.mxu0 0
    %1128 = vmatprep.subr.bf16.mxu0 0
    %1129 = vmatpush1.bf16.msra.mxu0 0
    %1130 = vmatprep.subr.bf16.mxu0 0
    %1131 = vmatpush1.bf16.msra.mxu0 0
    %1132 = vmatprep.subr.bf16.mxu0 0
    %1133 = vmatpush1.bf16.msra.mxu0 0
    %1134 = vmatprep.subr.bf16.mxu0 0
    %1135 = vmatpush1.bf16.msra.mxu0 0
    %1136 = vmatprep.mubr.bf16.mxu0 0
    %1137 = vmatmul.mubr.bf16.gmra.mrb[0].mxu0 %v1103
    %v1138 = vpop.f32.mrb[0].mxu0
    %v1139 = vadd.f32 0.0, %v1138
    %v1140 = vpop.f32.mrb[0].mxu0
    %v1141 = vadd.f32 0.0, %v1140
    %v1142 = vpop.f32.mrb[0].mxu0
    %v1143 = vpop.f32.mrb[0].mxu0
    %1144 = vdwg.mxu0
    %1145 = vmatprep.subr.bf16.mxu0 %v453
    %1146 = vmatpush1.bf16.msra.mxu0 %v452
    %1147 = vmatprep.subr.bf16.mxu0 %v457
    %1148 = vmatpush1.bf16.msra.mxu0 %v456
    %1149 = vmatprep.subr.bf16.mxu0 %v461
    %1150 = vmatpush1.bf16.msra.mxu0 %v460
    %1151 = vmatprep.subr.bf16.mxu0 %v465
    %1152 = vmatpush1.bf16.msra.mxu0 %v464
    %1153 = vmatprep.subr.bf16.mxu0 %v469
    %1154 = vmatpush1.bf16.msra.mxu0 %v468
    %1155 = vmatprep.subr.bf16.mxu0 %v473
    %1156 = vmatpush1.bf16.msra.mxu0 %v472
    %1157 = vmatprep.subr.bf16.mxu0 %v477
    %1158 = vmatpush1.bf16.msra.mxu0 %v476
    %1159 = vmatprep.subr.bf16.mxu0 %v481
    %1160 = vmatpush1.bf16.msra.mxu0 %v480
    %1161 = vmatprep.subr.bf16.mxu0 0
    %1162 = vmatpush1.bf16.msra.mxu0 0
    %1163 = vmatprep.subr.bf16.mxu0 0
    %1164 = vmatpush1.bf16.msra.mxu0 0
    %1165 = vmatprep.subr.bf16.mxu0 0
    %1166 = vmatpush1.bf16.msra.mxu0 0
    %1167 = vmatprep.subr.bf16.mxu0 0
    %1168 = vmatpush1.bf16.msra.mxu0 0
    %1169 = vmatprep.subr.bf16.mxu0 0
    %1170 = vmatpush1.bf16.msra.mxu0 0
    %1171 = vmatprep.subr.bf16.mxu0 0
    %1172 = vmatpush1.bf16.msra.mxu0 0
    %1173 = vmatprep.subr.bf16.mxu0 0
    %1174 = vmatpush1.bf16.msra.mxu0 0
    %1175 = vmatprep.subr.bf16.mxu0 0
    %1176 = vmatpush1.bf16.msra.mxu0 0
    %1177 = vmatprep.mubr.bf16.mxu0 0
    %1178 = vmatmul.mubr.bf16.gmra.mrb[0].mxu0 %v1103
    %v1179 = vpop.f32.mrb[0].mxu0
    %v1180 = vadd.f32 0.0, %v1179
    %v1181 = vpop.f32.mrb[0].mxu0
    %v1182 = vadd.f32 0.0, %v1181
    %v1183 = vpop.f32.mrb[0].mxu0
    %v1184 = vpop.f32.mrb[0].mxu0
    %1185 = vdwg.mxu0
    %v1186 = vadd.f32 %v1099, %v1139
    %v1187 = vadd.f32 %v1100, %v1141
    %v1188 = vadd.f32 %v1101, %v1180
    %v1189 = vadd.f32 %v1102, %v1182
    %v1190 = vxor.u32 %v1186, 2147483648
    %v1191 = vmul.f32 %v1190, 1.442695
    %v1192 = vpow.pop %v1191
    %v1193 = vadd.f32 %v1192, 1.0
    %v1194 = vrcp.pop %v1193
    %v1195 = vmul.f32 1.0, %v1194
    %v1196 = vxor.u32 %v1187, 2147483648
    %v1197 = vmul.f32 %v1196, 1.442695
    %v1198 = vpow.pop %v1197
    %v1199 = vadd.f32 %v1198, 1.0
    %v1200 = vrcp.pop %v1199
    %v1201 = vmul.f32 1.0, %v1200
    %v1202 = vtanh.pop %v1188
    %v1203 = vxor.u32 %v1189, 2147483648
    %v1204 = vmul.f32 %v1203, 1.442695
    %v1205 = vpow.pop %v1204
    %v1206 = vadd.f32 %v1205, 1.0
    %v1207 = vrcp.pop %v1206
    %v1208 = vmul.f32 1.0, %v1207
    %v1209 = vmul.f32 %v1093, %v1201
    %v1210 = vmul.f32 %v1195, %v1202
    %v1211 = vadd.f32 %v1209, %v1210
    %v1212 = vtanh.pop %v1211
    %v1213 = vmul.f32 %v1208, %v1212
    %s1214 = smul.u32 6, 4
    %s1215 = smul.addr %s1214, 8
    %s1216 = scalar_lea.vmem [#allocation2], %s1215
    %v1217 = vld [vmem:[%s1216] sm:$0xff]
    %v1218 = vld [vmem:[%s1216 + $0x8] sm:$0xff]
    %v1219 = vld [vmem:[%s1216 + $0x10] sm:$0xff]
    %v1220 = vld [vmem:[%s1216 + $0x18] sm:$0xff]
    %v1221 = vpack.c.bf16 %v1213, %v1213
    %1222 = vmatprep.subr.bf16.mxu0 %v451
    %1223 = vmatpush1.bf16.msra.mxu0 %v450
    %1224 = vmatprep.subr.bf16.mxu0 %v455
    %1225 = vmatpush1.bf16.msra.mxu0 %v454
    %1226 = vmatprep.subr.bf16.mxu0 %v459
    %1227 = vmatpush1.bf16.msra.mxu0 %v458
    %1228 = vmatprep.subr.bf16.mxu0 %v463
    %1229 = vmatpush1.bf16.msra.mxu0 %v462
    %1230 = vmatprep.subr.bf16.mxu0 %v467
    %1231 = vmatpush1.bf16.msra.mxu0 %v466
    %1232 = vmatprep.subr.bf16.mxu0 %v471
    %1233 = vmatpush1.bf16.msra.mxu0 %v470
    %1234 = vmatprep.subr.bf16.mxu0 %v475
    %1235 = vmatpush1.bf16.msra.mxu0 %v474
    %1236 = vmatprep.subr.bf16.mxu0 %v479
    %1237 = vmatpush1.bf16.msra.mxu0 %v478
    %1238 = vmatprep.subr.bf16.mxu0 0
    %1239 = vmatpush1.bf16.msra.mxu0 0
    %1240 = vmatprep.subr.bf16.mxu0 0
    %1241 = vmatpush1.bf16.msra.mxu0 0
    %1242 = vmatprep.subr.bf16.mxu0 0
    %1243 = vmatpush1.bf16.msra.mxu0 0
    %1244 = vmatprep.subr.bf16.mxu0 0
    %1245 = vmatpush1.bf16.msra.mxu0 0
    %1246 = vmatprep.subr.bf16.mxu0 0
    %1247 = vmatpush1.bf16.msra.mxu0 0
    %1248 = vmatprep.subr.bf16.mxu0 0
    %1249 = vmatpush1.bf16.msra.mxu0 0
    %1250 = vmatprep.subr.bf16.mxu0 0
    %1251 = vmatpush1.bf16.msra.mxu0 0
    %1252 = vmatprep.subr.bf16.mxu0 0
    %1253 = vmatpush1.bf16.msra.mxu0 0
    %1254 = vmatprep.mubr.bf16.mxu0 0
    %1255 = vmatmul.mubr.bf16.gmra.mrb[0].mxu0 %v1221
    %v1256 = vpop.f32.mrb[0].mxu0
    %v1257 = vadd.f32 0.0, %v1256
    %v1258 = vpop.f32.mrb[0].mxu0
    %v1259 = vadd.f32 0.0, %v1258
    %v1260 = vpop.f32.mrb[0].mxu0
    %v1261 = vpop.f32.mrb[0].mxu0
    %1262 = vdwg.mxu0
    %1263 = vmatprep.subr.bf16.mxu0 %v453
    %1264 = vmatpush1.bf16.msra.mxu0 %v452
    %1265 = vmatprep.subr.bf16.mxu0 %v457
    %1266 = vmatpush1.bf16.msra.mxu0 %v456
    %1267 = vmatprep.subr.bf16.mxu0 %v461
    %1268 = vmatpush1.bf16.msra.mxu0 %v460
    %1269 = vmatprep.subr.bf16.mxu0 %v465
    %1270 = vmatpush1.bf16.msra.mxu0 %v464
    %1271 = vmatprep.subr.bf16.mxu0 %v469
    %1272 = vmatpush1.bf16.msra.mxu0 %v468
    %1273 = vmatprep.subr.bf16.mxu0 %v473
    %1274 = vmatpush1.bf16.msra.mxu0 %v472
    %1275 = vmatprep.subr.bf16.mxu0 %v477
    %1276 = vmatpush1.bf16.msra.mxu0 %v476
    %1277 = vmatprep.subr.bf16.mxu0 %v481
    %1278 = vmatpush1.bf16.msra.mxu0 %v480
    %1279 = vmatprep.subr.bf16.mxu0 0
    %1280 = vmatpush1.bf16.msra.mxu0 0
    %1281 = vmatprep.subr.bf16.mxu0 0
    %1282 = vmatpush1.bf16.msra.mxu0 0
    %1283 = vmatprep.subr.bf16.mxu0 0
    %1284 = vmatpush1.bf16.msra.mxu0 0
    %1285 = vmatprep.subr.bf16.mxu0 0
    %1286 = vmatpush1.bf16.msra.mxu0 0
    %1287 = vmatprep.subr.bf16.mxu0 0
    %1288 = vmatpush1.bf16.msra.mxu0 0
    %1289 = vmatprep.subr.bf16.mxu0 0
    %1290 = vmatpush1.bf16.msra.mxu0 0
    %1291 = vmatprep.subr.bf16.mxu0 0
    %1292 = vmatpush1.bf16.msra.mxu0 0
    %1293 = vmatprep.subr.bf16.mxu0 0
    %1294 = vmatpush1.bf16.msra.mxu0 0
    %1295 = vmatprep.mubr.bf16.mxu0 0
    %1296 = vmatmul.mubr.bf16.gmra.mrb[0].mxu0 %v1221
    %v1297 = vpop.f32.mrb[0].mxu0
    %v1298 = vadd.f32 0.0, %v1297
    %v1299 = vpop.f32.mrb[0].mxu0
    %v1300 = vadd.f32 0.0, %v1299
    %v1301 = vpop.f32.mrb[0].mxu0
    %v1302 = vpop.f32.mrb[0].mxu0
    %1303 = vdwg.mxu0
    %v1304 = vadd.f32 %v1217, %v1257
    %v1305 = vadd.f32 %v1218, %v1259
    %v1306 = vadd.f32 %v1219, %v1298
    %v1307 = vadd.f32 %v1220, %v1300
    %v1308 = vxor.u32 %v1304, 2147483648
    %v1309 = vmul.f32 %v1308, 1.442695
    %v1310 = vpow.pop %v1309
    %v1311 = vadd.f32 %v1310, 1.0
    %v1312 = vrcp.pop %v1311
    %v1313 = vmul.f32 1.0, %v1312
    %v1314 = vxor.u32 %v1305, 2147483648
    %v1315 = vmul.f32 %v1314, 1.442695
    %v1316 = vpow.pop %v1315
    %v1317 = vadd.f32 %v1316, 1.0
    %v1318 = vrcp.pop %v1317
    %v1319 = vmul.f32 1.0, %v1318
    %v1320 = vtanh.pop %v1306
    %v1321 = vxor.u32 %v1307, 2147483648
    %v1322 = vmul.f32 %v1321, 1.442695
    %v1323 = vpow.pop %v1322
    %v1324 = vadd.f32 %v1323, 1.0
    %v1325 = vrcp.pop %v1324
    %v1326 = vmul.f32 1.0, %v1325
    %v1327 = vmul.f32 %v1211, %v1319
    %v1328 = vmul.f32 %v1313, %v1320
    %v1329 = vadd.f32 %v1327, %v1328
    %v1330 = vtanh.pop %v1329
    %v1331 = vmul.f32 %v1326, %v1330
    %s1332 = smul.u32 7, 4
    %s1333 = smul.addr %s1332, 8
    %s1334 = scalar_lea.vmem [#allocation2], %s1333
    %v1335 = vld [vmem:[%s1334] sm:$0xff]
    %v1336 = vld [vmem:[%s1334 + $0x8] sm:$0xff]
    %v1337 = vld [vmem:[%s1334 + $0x10] sm:$0xff]
    %v1338 = vld [vmem:[%s1334 + $0x18] sm:$0xff]
    %v1339 = vpack.c.bf16 %v1331, %v1331
    %1340 = vmatprep.subr.bf16.mxu0 %v451
    %1341 = vmatpush1.bf16.msra.mxu0 %v450
    %1342 = vmatprep.subr.bf16.mxu0 %v455
    %1343 = vmatpush1.bf16.msra.mxu0 %v454
    %1344 = vmatprep.subr.bf16.mxu0 %v459
    %1345 = vmatpush1.bf16.msra.mxu0 %v458
    %1346 = vmatprep.subr.bf16.mxu0 %v463
    %1347 = vmatpush1.bf16.msra.mxu0 %v462
    %1348 = vmatprep.subr.bf16.mxu0 %v467
    %1349 = vmatpush1.bf16.msra.mxu0 %v466
    %1350 = vmatprep.subr.bf16.mxu0 %v471
    %1351 = vmatpush1.bf16.msra.mxu0 %v470
    %1352 = vmatprep.subr.bf16.mxu0 %v475
    %1353 = vmatpush1.bf16.msra.mxu0 %v474
    %1354 = vmatprep.subr.bf16.mxu0 %v479
    %1355 = vmatpush1.bf16.msra.mxu0 %v478
    %1356 = vmatprep.subr.bf16.mxu0 0
    %1357 = vmatpush1.bf16.msra.mxu0 0
    %1358 = vmatprep.subr.bf16.mxu0 0
    %1359 = vmatpush1.bf16.msra.mxu0 0
    %1360 = vmatprep.subr.bf16.mxu0 0
    %1361 = vmatpush1.bf16.msra.mxu0 0
    %1362 = vmatprep.subr.bf16.mxu0 0
    %1363 = vmatpush1.bf16.msra.mxu0 0
    %1364 = vmatprep.subr.bf16.mxu0 0
    %1365 = vmatpush1.bf16.msra.mxu0 0
    %1366 = vmatprep.subr.bf16.mxu0 0
    %1367 = vmatpush1.bf16.msra.mxu0 0
    %1368 = vmatprep.subr.bf16.mxu0 0
    %1369 = vmatpush1.bf16.msra.mxu0 0
    %1370 = vmatprep.subr.bf16.mxu0 0
    %1371 = vmatpush1.bf16.msra.mxu0 0
    %1372 = vmatprep.mubr.bf16.mxu0 0
    %1373 = vmatmul.mubr.bf16.gmra.mrb[0].mxu0 %v1339
    %v1374 = vpop.f32.mrb[0].mxu0
    %v1375 = vadd.f32 0.0, %v1374
    %v1376 = vpop.f32.mrb[0].mxu0
    %v1377 = vadd.f32 0.0, %v1376
    %v1378 = vpop.f32.mrb[0].mxu0
    %v1379 = vpop.f32.mrb[0].mxu0
    %1380 = vdwg.mxu0
    %1381 = vmatprep.subr.bf16.mxu0 %v453
    %1382 = vmatpush1.bf16.msra.mxu0 %v452
    %1383 = vmatprep.subr.bf16.mxu0 %v457
    %1384 = vmatpush1.bf16.msra.mxu0 %v456
    %1385 = vmatprep.subr.bf16.mxu0 %v461
    %1386 = vmatpush1.bf16.msra.mxu0 %v460
    %1387 = vmatprep.subr.bf16.mxu0 %v465
    %1388 = vmatpush1.bf16.msra.mxu0 %v464
    %1389 = vmatprep.subr.bf16.mxu0 %v469
    %1390 = vmatpush1.bf16.msra.mxu0 %v468
    %1391 = vmatprep.subr.bf16.mxu0 %v473
    %1392 = vmatpush1.bf16.msra.mxu0 %v472
    %1393 = vmatprep.subr.bf16.mxu0 %v477
    %1394 = vmatpush1.bf16.msra.mxu0 %v476
    %1395 = vmatprep.subr.bf16.mxu0 %v481
    %1396 = vmatpush1.bf16.msra.mxu0 %v480
    %1397 = vmatprep.subr.bf16.mxu0 0
    %1398 = vmatpush1.bf16.msra.mxu0 0
    %1399 = vmatprep.subr.bf16.mxu0 0
    %1400 = vmatpush1.bf16.msra.mxu0 0
    %1401 = vmatprep.subr.bf16.mxu0 0
    %1402 = vmatpush1.bf16.msra.mxu0 0
    %1403 = vmatprep.subr.bf16.mxu0 0
    %1404 = vmatpush1.bf16.msra.mxu0 0
    %1405 = vmatprep.subr.bf16.mxu0 0
    %1406 = vmatpush1.bf16.msra.mxu0 0
    %1407 = vmatprep.subr.bf16.mxu0 0
    %1408 = vmatpush1.bf16.msra.mxu0 0
    %1409 = vmatprep.subr.bf16.mxu0 0
    %1410 = vmatpush1.bf16.msra.mxu0 0
    %1411 = vmatprep.subr.bf16.mxu0 0
    %1412 = vmatpush1.bf16.msra.mxu0 0
    %1413 = vmatprep.mubr.bf16.mxu0 0
    %1414 = vmatmul.mubr.bf16.gmra.mrb[0].mxu0 %v1339
    %v1415 = vpop.f32.mrb[0].mxu0
    %v1416 = vadd.f32 0.0, %v1415
    %v1417 = vpop.f32.mrb[0].mxu0
    %v1418 = vadd.f32 0.0, %v1417
    %v1419 = vpop.f32.mrb[0].mxu0
    %v1420 = vpop.f32.mrb[0].mxu0
    %1421 = vdwg.mxu0
    %v1422 = vadd.f32 %v1335, %v1375
    %v1423 = vadd.f32 %v1336, %v1377
    %v1424 = vadd.f32 %v1337, %v1416
    %v1425 = vadd.f32 %v1338, %v1418
    %v1426 = vxor.u32 %v1422, 2147483648
    %v1427 = vmul.f32 %v1426, 1.442695
    %v1428 = vpow.pop %v1427
    %v1429 = vadd.f32 %v1428, 1.0
    %v1430 = vrcp.pop %v1429
    %v1431 = vmul.f32 1.0, %v1430
    %v1432 = vxor.u32 %v1423, 2147483648
    %v1433 = vmul.f32 %v1432, 1.442695
    %v1434 = vpow.pop %v1433
    %v1435 = vadd.f32 %v1434, 1.0
    %v1436 = vrcp.pop %v1435
    %v1437 = vmul.f32 1.0, %v1436
    %v1438 = vtanh.pop %v1424
    %v1439 = vxor.u32 %v1425, 2147483648
    %v1440 = vmul.f32 %v1439, 1.442695
    %v1441 = vpow.pop %v1440
    %v1442 = vadd.f32 %v1441, 1.0
    %v1443 = vrcp.pop %v1442
    %v1444 = vmul.f32 1.0, %v1443
    %v1445 = vmul.f32 %v1329, %v1437
    %v1446 = vmul.f32 %v1431, %v1438
    %v1447 = vadd.f32 %v1445, %v1446
    %v1448 = vtanh.pop %v1447
    %v1449 = vmul.f32 %v1444, %v1448
    %v1450 = vpack.c.bf16 %v1449, %v1449
    %v1451 = vld [vmem:[%s4] sm:$0xf]
    %v1452 = vld [vmem:[%s4 + $0x4] sm:$0xf]
    %v1453 = vld [vmem:[%s4 + $0x8] sm:$0xf]
    %v1454 = vld [vmem:[%s4 + $0xc] sm:$0xf]
    %v1455 = vld [vmem:[%s4 + $0x10] sm:$0xf]
    %v1456 = vld [vmem:[%s4 + $0x14] sm:$0xf]
    %v1457 = vld [vmem:[%s4 + $0x18] sm:$0xf]
    %v1458 = vld [vmem:[%s4 + $0x1c] sm:$0xf]
    %v1459 = vld [vmem:[%s4 + $0x20] sm:$0xf]
    %v1460 = vld [vmem:[%s4 + $0x24] sm:$0xf]
    %v1461 = vld [vmem:[%s4 + $0x28] sm:$0xf]
    %v1462 = vld [vmem:[%s4 + $0x2c] sm:$0xf]
    %v1463 = vld [vmem:[%s4 + $0x30] sm:$0xf]
    %v1464 = vld [vmem:[%s4 + $0x34] sm:$0xf]
    %v1465 = vld [vmem:[%s4 + $0x38] sm:$0xf]
    %v1466 = vld [vmem:[%s4 + $0x3c] sm:$0xf]
    %v1467 = vld [vmem:[%s5] sm:$0x1]
    %v1469 = vlaneseq
    %v1470 = vshrl.u32 %v1469, 7
    %v1471 = vsub.s32 0, %v1470
    %v1472 = vrot.slane %v1467, %v1471
    %v1490 = vunpack.c.l.b16 %v1451
    %v1491 = vunpack.c.l.b16 %v1452
    %v1492 = vunpack.c.l.b16 %v1453
    %v1493 = vunpack.c.l.b16 %v1454
    %v1494 = vunpack.c.l.b16 %v1455
    %v1495 = vunpack.c.l.b16 %v1456
    %v1496 = vunpack.c.l.b16 %v1457
    %v1497 = vunpack.c.l.b16 %v1458
    %v1498 = vunpack.c.l.b16 %v1459
    %v1499 = vunpack.c.l.b16 %v1460
    %v1500 = vunpack.c.l.b16 %v1461
    %v1501 = vunpack.c.l.b16 %v1462
    %v1502 = vunpack.c.l.b16 %v1463
    %v1503 = vunpack.c.l.b16 %v1464
    %v1504 = vunpack.c.l.b16 %v1465
    %v1505 = vunpack.c.l.b16 %v1466
    %v1506 = vpack.c.b16 %v1491, %v1490
    %v1507 = vpack.c.b16 %v1493, %v1492
    %v1508 = vpack.c.b16 %v1495, %v1494
    %v1509 = vpack.c.b16 %v1497, %v1496
    %v1510 = vpack.c.b16 %v1499, %v1498
    %v1511 = vpack.c.b16 %v1501, %v1500
    %v1512 = vpack.c.b16 %v1503, %v1502
    %v1513 = vpack.c.b16 %v1505, %v1504
    %1522 = vmatprep.subr.bf16.mxu0 0
    %1523 = vmatpush1.bf16.msra.mxu0 %v1506
    %1524 = vmatprep.subr.bf16.mxu0 0
    %1525 = vmatpush1.bf16.msra.mxu0 %v1507
    %1526 = vmatprep.subr.bf16.mxu0 0
    %1527 = vmatpush1.bf16.msra.mxu0 %v1508
    %1528 = vmatprep.subr.bf16.mxu0 0
    %1529 = vmatpush1.bf16.msra.mxu0 %v1509
    %1530 = vmatprep.subr.bf16.mxu0 0
    %1531 = vmatpush1.bf16.msra.mxu0 %v1510
    %1532 = vmatprep.subr.bf16.mxu0 0
    %1533 = vmatpush1.bf16.msra.mxu0 %v1511
    %1534 = vmatprep.subr.bf16.mxu0 0
    %1535 = vmatpush1.bf16.msra.mxu0 %v1512
    %1536 = vmatprep.subr.bf16.mxu0 0
    %1537 = vmatpush1.bf16.msra.mxu0 %v1513
    %1538 = vmatprep.subr.bf16.mxu0 0
    %1539 = vmatpush1.bf16.msra.mxu0 0
    %1540 = vmatprep.subr.bf16.mxu0 0
    %1541 = vmatpush1.bf16.msra.mxu0 0
    %1542 = vmatprep.subr.bf16.mxu0 0
    %1543 = vmatpush1.bf16.msra.mxu0 0
    %1544 = vmatprep.subr.bf16.mxu0 0
    %1545 = vmatpush1.bf16.msra.mxu0 0
    %1546 = vmatprep.subr.bf16.mxu0 0
    %1547 = vmatpush1.bf16.msra.mxu0 0
    %1548 = vmatprep.subr.bf16.mxu0 0
    %1549 = vmatpush1.bf16.msra.mxu0 0
    %1550 = vmatprep.subr.bf16.mxu0 0
    %1551 = vmatpush1.bf16.msra.mxu0 0
    %1552 = vmatprep.subr.bf16.mxu0 0
    %1553 = vmatpush1.bf16.msra.mxu0 0
    %1554 = vmatprep.mubr.bf16.mxu0 0
    %1555 = vmatmul.mubr.bf16.gmra.mrb[0].mxu0 %v1450
    %v1556 = vpop.f32.mrb[0].mxu0
    %v1557 = vadd.f32 %v1472, %v1556
    %v1558 = vpop.f32.mrb[0].mxu0
    %v1559 = vpop.f32.mrb[0].mxu0
    %v1560 = vpop.f32.mrb[0].mxu0
    %1561 = vdwg.mxu0
    %v1562 = vxor.u32 %v1557, 2147483648
    %v1563 = vmul.f32 %v1562, 1.442695
    %v1564 = vpow.pop %v1563
    %v1565 = vadd.f32 %v1564, 1.0
    %v1566 = vrcp.pop %v1565
    %v1567 = vmul.f32 1.0, %v1566
    %1568 = vst [vmem:[%s6] sm:$0xff] %v1567
    // Predicated region
    $region34: #{lstm_model_forward.1} parent=1 // pred_check
      _
    $region35: #{lstm_model_forward.1} parent=1 // pred_check_branch
      %1570 = sbr.rel (0) target = $region37
    $region36: #{lstm_model_forward.1} parent=1 // pred_region
      _
    $region37: #{lstm_model_forward.1} parent=1 // pred_fallthru
      _
    // Predicated region
    $region38: #{lstm_model_forward.1} parent=1 // pred_check
      _
    $region39: #{lstm_model_forward.1} parent=1 // pred_check_branch
      %1572 = sbr.rel (0) target = $region41
    $region40: #{lstm_model_forward.1} parent=1 // pred_region
      _
    $region41: #{lstm_model_forward.1} parent=1 // pred_fallthru
      _
    %1573 = vsyncpa [#allocation4], 1
    %1574 = vsyncpa [#allocation6], 1

</llo_original>
